<compile_context>
chip_gen: v7x
topology: tpu7x:2x2x1
jax: 0.10.0
libtpu: 0.0.40
codegen_flags: <defaults>
</compile_context>

<pallas_src>
import functools

import jax
import jax.numpy as jnp
from jax.experimental import pallas as pl
from jax.experimental.pallas import tpu as pltpu


def _round_up(x, m):
    return (x + m - 1) // m * m


# ----------------------------------------------------------------------------
# Fused kernel
# ----------------------------------------------------------------------------
def _compgcn_fused_kernel(*refs, opn, eps):
    """Per-edge compose + matmul + scaled one-hot scatter each grid step;
    self-loop + bias + BatchNorm1d + rel@w_rel fused into the last step."""
    has_rel = opn in ("mult", "sub")
    if has_rel:
        (dst_ref, scale_ref, h_ref, r_ref, w_ref, xl_ref, lrel_ref, lw_ref,
         bias_ref, gamma_ref, beta_ref, rel_ref, wrel_ref,
         ox_ref, orel_ref) = refs
    else:  # composition (ccorr) already applied outside the kernel
        (dst_ref, scale_ref, h_ref, w_ref, xl_ref, lw_ref,
         bias_ref, gamma_ref, beta_ref, rel_ref, wrel_ref,
         ox_ref, orel_ref) = refs
        r_ref = None
        lrel_ref = None

    k = pl.program_id(0)

    @pl.when(k == 0)
    def _():
        ox_ref[...] = jnp.zeros_like(ox_ref)

    # ---- per-edge message (compose in f32; MXU operands in weight dtype) ----
    if opn == "mult":
        edge_data = h_ref[...].astype(jnp.float32) * r_ref[...].astype(jnp.float32)
    elif opn == "sub":
        edge_data = h_ref[...].astype(jnp.float32) - r_ref[...].astype(jnp.float32)
    else:  # "precomposed"
        edge_data = h_ref[...].astype(jnp.float32)

    w = w_ref[0]                                    # [Din_p, Dout_p] in_w or out_w
    msg = jnp.dot(edge_data.astype(w.dtype), w,
                  preferred_element_type=jnp.float32)     # [tE, Dout_p] f32

    # ---- scaled one-hot scatter-add (exact, f32) ----------------------------
    # onehot[v, e] = (dst[e] == v) * (norm[e] * edge_weight[e])
    # standard-form [V, tE] @ [tE, Dout] contraction -> no transpose on MXU path.
    te = msg.shape[0]
    v = ox_ref.shape[0]
    node_ids = jax.lax.broadcasted_iota(jnp.int32, (v, te), 0)
    onehot = jnp.where(dst_ref[...] == node_ids, scale_ref[...], 0.0)  # [V, tE] f32
    ox_ref[...] += jnp.dot(onehot, msg, preferred_element_type=jnp.float32)

    # ---- epilogue on the last edge block ------------------------------------
    @pl.when(k == pl.num_programs(0) - 1)
    def _():
        if opn == "mult":
            comp = xl_ref[...] * lrel_ref[...]
        elif opn == "sub":
            comp = xl_ref[...] - lrel_ref[...]
        else:
            comp = xl_ref[...]
        loop_msg = jnp.dot(comp.astype(lw_ref.dtype), lw_ref[...],
                           preferred_element_type=jnp.float32)          # [V, Dout_p]
        h = ox_ref[...] / 3.0 + loop_msg / 3.0 + bias_ref[...]
        # BatchNorm1d: training-mode batch statistics, biased variance, eps=1e-5
        mean = jnp.mean(h, axis=0, keepdims=True)
        var = jnp.mean((h - mean) * (h - mean), axis=0, keepdims=True)
        ox_ref[...] = ((h - mean) * jax.lax.rsqrt(var + eps)
                       * gamma_ref[...] + beta_ref[...])
        # relation transform (tiny) fused here to avoid a separate launch
        orel_ref[...] = jnp.dot(rel_ref[...], wrel_ref[...],
                                preferred_element_type=jnp.float32)


# ----------------------------------------------------------------------------
# Pallas wrapper (padding, blocking, specs)
# ----------------------------------------------------------------------------
def compgcn_pallas(params, *, dst, scale, h_edge, r_edge, x_loop, loop_rel,
                   rel, num_nodes, opn, block_e=256,
                   mxu_dtype=jnp.bfloat16, eps=1e-5):
    e, din = h_edge.shape
    dout = params["in_w"].shape[1]
    r_rows = rel.shape[0]
    has_rel = opn in ("mult", "sub")

    # lane-dense feature dims
    din_p = _round_up(din, 128)
    dout_p = _round_up(dout, 128)

    # edge blocking: first half -> in_w, second half -> out_w, each half padded
    # with zero-scale dummy edges so the split stays on a block boundary.
    first_rows = e // 2
    second_rows = e - first_rows
    block_e = min(block_e, _round_up(max(first_rows, second_rows), 128))
    block_e = _round_up(block_e, 128)
    first_p = _round_up(first_rows, block_e)
    second_p = _round_up(second_rows, block_e)
    half_blocks = first_p // block_e
    nblocks = (first_p + second_p) // block_e

    def pad_cols(a, cols, value=0.0):
        return jnp.pad(a, [(0, 0)] * (a.ndim - 1) + [(0, cols - a.shape[-1])],
                       constant_values=value)

    def pad_rows(a, rows, value=0):
        return jnp.pad(a, [(0, rows - a.shape[0])] + [(0, 0)] * (a.ndim - 1),
                       constant_values=value)

    def split_pad(a):
        return jnp.concatenate([pad_rows(a[:first_rows], first_p),
                                pad_rows(a[first_rows:], second_p)], axis=0)

    def pad_mat(w):
        return jnp.pad(w, [(0, din_p - w.shape[0]), (0, dout_p - w.shape[1])])

    # parameters (padded; MXU operands cast to bf16, accumulation stays f32)
    w_stacked = jnp.stack([pad_mat(params["in_w"]),
                           pad_mat(params["out_w"])]).astype(mxu_dtype)
    loop_w = pad_mat(params["loop_w"]).astype(mxu_dtype)
    w_rel = pad_mat(params["w_rel"]).astype(jnp.float32)
    bias = pad_cols(params["bias"].reshape(1, -1).astype(jnp.float32), dout_p)
    gamma = pad_cols(params["bn_gamma"].reshape(1, -1).astype(jnp.float32),
                     dout_p, 1.0)
    beta = pad_cols(params["bn_beta"].reshape(1, -1).astype(jnp.float32), dout_p)

    # edge tensors (lane-dense rows for dst / folded scale)
    dst_row = split_pad(dst.astype(jnp.int32)).reshape(1, -1)
    scale_row = split_pad(scale.astype(jnp.float32)).reshape(1, -1)
    h_p = split_pad(pad_cols(h_edge.astype(jnp.float32), din_p)).astype(mxu_dtype)

    inputs = [dst_row, scale_row, h_p]
    in_specs = [
        pl.BlockSpec((1, block_e), lambda k: (0, k)),            # dst row
        pl.BlockSpec((1, block_e), lambda k: (0, k)),            # norm*weight row
        pl.BlockSpec((block_e, din_p), lambda k: (k, 0)),        # src features
    ]
    if has_rel:
        r_p = split_pad(pad_cols(r_edge.astype(jnp.float32), din_p)).astype(mxu_dtype)
        inputs.append(r_p)
        in_specs.append(pl.BlockSpec((block_e, din_p), lambda k: (k, 0)))

    # stacked in/out weights: index_map picks the slab, only one is resident
    inputs.append(w_stacked)
    in_specs.append(pl.BlockSpec(
        (1, din_p, dout_p),
        lambda k: ((k >= half_blocks).astype(jnp.int32), 0, 0)))

    inputs.append(pad_cols(x_loop.astype(jnp.float32), din_p))
    in_specs.append(pl.BlockSpec((num_nodes, din_p), lambda k: (0, 0)))
    if has_rel:
        inputs.append(pad_cols(loop_rel.astype(jnp.float32), din_p))
        in_specs.append(pl.BlockSpec((1, din_p), lambda k: (0, 0)))

    inputs += [loop_w, bias, gamma, beta,
               pad_cols(rel.astype(jnp.float32), din_p), w_rel]
    in_specs += [
        pl.BlockSpec((din_p, dout_p), lambda k: (0, 0)),         # loop_w
        pl.BlockSpec((1, dout_p), lambda k: (0, 0)),             # bias
        pl.BlockSpec((1, dout_p), lambda k: (0, 0)),             # bn gamma
        pl.BlockSpec((1, dout_p), lambda k: (0, 0)),             # bn beta
        pl.BlockSpec((r_rows, din_p), lambda k: (0, 0)),         # rel
        pl.BlockSpec((din_p, dout_p), lambda k: (0, 0)),         # w_rel
    ]

    kernel = functools.partial(_compgcn_fused_kernel, opn=opn, eps=eps)

    out_x_p, out_rel_p = pl.pallas_call(
        kernel,
        out_shape=(jax.ShapeDtypeStruct((num_nodes, dout_p), jnp.float32),
                   jax.ShapeDtypeStruct((r_rows, dout_p), jnp.float32)),
        grid_spec=pltpu.PrefetchScalarGridSpec(
            num_scalar_prefetch=0,
            grid=(nblocks,),
            in_specs=in_specs,
            out_specs=[pl.BlockSpec((num_nodes, dout_p), lambda k: (0, 0)),
                       pl.BlockSpec((r_rows, dout_p), lambda k: (0, 0))],
        ),
        compiler_params=pltpu.CompilerParams(
            dimension_semantics=("arbitrary",)),
    )(*inputs)

    return out_x_p[:, :dout], out_rel_p[:, :dout]


# ----------------------------------------------------------------------------
# Composition helpers (plain JAX)
# ----------------------------------------------------------------------------
def _ccorr(a, b):
    # TODO(synk): no FFT primitive in Pallas; circular correlation
    # (irfft(conj(rfft(a)) * rfft(b))) is computed in plain JAX, pre-kernel.
    fa = jnp.fft.rfft(a, axis=-1)
    fb = jnp.fft.rfft(b, axis=-1)
    return jnp.fft.irfft(jnp.conj(fa) * fb, n=a.shape[-1], axis=-1).astype(a.dtype)


def _comp_jax(h, r, opn):
    if opn == "mult":
        return h * r
    if opn == "sub":
        return h - r
    if opn == "corr":
        return _ccorr(h, r)
    raise KeyError(opn)


# ----------------------------------------------------------------------------
# Full forward
# ----------------------------------------------------------------------------
def compgcn_forward(params, x, rel_repr, src, dst, edge_type, edge_norm,
                    edge_weight, opn="mult", mxu_dtype=jnp.bfloat16,
                    block_e=256):
    v = x.shape[0]

    # relation features (optionally through bases) -- tiny matmul, plain jnp
    # (pallas_call launch overhead would dominate by orders of magnitude).
    if params["rel_wt"] is not None:
        rel = params["rel_wt"] @ rel_repr
    else:
        rel = rel_repr

    # data-dependent gathers (glue)
    h_src = x[src]             # [E, Din]
    rel_e = rel[edge_type]     # [E, Din]

    # fold norm * edge_weight into a single per-edge scale
    scale = (edge_norm.astype(jnp.float32) * edge_weight.astype(jnp.float32))

    if opn == "corr":
        h_edge = _ccorr(h_src, rel_e)
        r_edge = None
        x_loop = _ccorr(x, jnp.broadcast_to(params["loop_rel"], x.shape))
        loop_rel = None
        kopn = "precomposed"
    else:
        h_edge, r_edge = h_src, rel_e
        x_loop, loop_rel = x, params["loop_rel"]
        kopn = opn

    return compgcn_pallas(params, dst=dst, scale=scale, h_edge=h_edge,
                          r_edge=r_edge, x_loop=x_loop, loop_rel=loop_rel,
                          rel=rel, num_nodes=v, opn=kopn,
                          block_e=block_e, mxu_dtype=mxu_dtype)


# ----------------------------------------------------------------------------
# Pure-JAX reference (for correctness check)
# ----------------------------------------------------------------------------
def reference_forward(params, x, rel_repr, src, dst, edge_type, edge_norm,
                      edge_weight, opn):
    rel = rel_repr if params["rel_wt"] is None else params["rel_wt"] @ rel_repr
    h_src = x[src]
    rel_e = rel[edge_type]
    ed = _comp_jax(h_src, rel_e, opn)
    e = ed.shape[0]
    msg = jnp.concatenate([ed[: e // 2] @ params["in_w"],
                           ed[e // 2:] @ params["out_w"]], axis=0)
    msg = msg * edge_norm[:, None] * edge_weight[:, None]
    agg = jax.ops.segment_sum(msg, dst, num_segments=x.shape[0]) / 3.0
    loop = _comp_jax(x, jnp.broadcast_to(params["loop_rel"], x.shape),
                     opn) @ params["loop_w"] / 3.0
    h = agg + loop + params["bias"]
    mean = h.mean(axis=0)
    var = ((h - mean) ** 2).mean(axis=0)
    h = (h - mean) / jnp.sqrt(var + 1e-5) * params["bn_gamma"] + params["bn_beta"]
    return h, rel @ params["w_rel"]


# ----------------------------------------------------------------------------
# Deterministic parameter init (xavier_normal, gain = relu gain = sqrt(2))
# ----------------------------------------------------------------------------
def xavier_normal(key, shape, gain):
    fan_in, fan_out = shape[0], shape[1]
    std = gain * (2.0 / (fan_in + fan_out)) ** 0.5
    return std * jax.random.normal(key, shape, dtype=jnp.float32)


if __name__ == "__main__":
    V, E = 64, 256
    IN_CH, OUT_CH = 32, 32
    NUM_REL = 4
    R = NUM_REL * 2          # num_rel * 2 relation directions
    OPN = "mult"             # composition operator used for this run

    key = jax.random.PRNGKey(0)
    keys = jax.random.split(key, 12)
    gain = 2.0 ** 0.5

    params = {
        "in_w":    xavier_normal(keys[0], (IN_CH, OUT_CH), gain),
        "out_w":   xavier_normal(keys[1], (IN_CH, OUT_CH), gain),
        "loop_w":  xavier_normal(keys[2], (IN_CH, OUT_CH), gain),
        "w_rel":   xavier_normal(keys[3], (IN_CH, OUT_CH), gain),
        "loop_rel": xavier_normal(keys[4], (1, IN_CH), gain),
        "bias":     jnp.zeros((OUT_CH,), jnp.float32),
        "bn_gamma": jnp.ones((OUT_CH,), jnp.float32),
        "bn_beta":  jnp.zeros((OUT_CH,), jnp.float32),
        "rel_wt":   None,    # num_base = -1 -> no basis decomposition
    }

    x = jax.random.normal(keys[5], (V, IN_CH), jnp.float32)
    rel_repr = jax.random.normal(keys[6], (R, IN_CH), jnp.float32)
    src = jax.random.randint(keys[7], (E,), 0, V)
    dst = jax.random.randint(keys[8], (E,), 0, V)
    edge_type = jax.random.randint(keys[9], (E,), 0, R)
    edge_norm = jax.random.uniform(keys[10], (E,), jnp.float32, 0.1, 1.0)
    edge_weight = jax.random.uniform(keys[11], (E,), jnp.float32, 0.5, 1.5)

    out_x, out_rel = compgcn_forward(params, x, rel_repr, src, dst,
                                     edge_type, edge_norm, edge_weight, opn=OPN)
    jax.block_until_ready((out_x, out_rel))

    ref_x, ref_rel = reference_forward(params, x, rel_repr, src, dst,
                                       edge_type, edge_norm, edge_weight, OPN)
    assert out_x.shape == (V, OUT_CH) and out_rel.shape == (R, OUT_CH)
    # bf16 MXU operands (with f32 accumulation) in the fused kernel -> slightly
    # looser tolerance on the node output; rel path is pure f32.
    assert jnp.allclose(out_x, ref_x, atol=5e-2, rtol=5e-2), \
        float(jnp.max(jnp.abs(out_x - ref_x)))
    assert jnp.allclose(out_rel, ref_rel, atol=1e-2, rtol=1e-2)
    print("KERNEL_OK")
</pallas_src>

<mosaic_0001>
module attributes {stable_mosaic.version = 11 : i64} {
  func.func @_compgcn_fused_kernel(%arg0: i32, %arg1: memref<1x128xi32, #tpu.memory_space<vmem>>, %arg2: memref<1x128xf32, #tpu.memory_space<vmem>>, %arg3: memref<128x128xbf16, #tpu.memory_space<vmem>>, %arg4: memref<128x128xbf16, #tpu.memory_space<vmem>>, %arg5: memref<1x128x128xbf16, #tpu.memory_space<vmem>>, %arg6: memref<64x128xf32, #tpu.memory_space<vmem>>, %arg7: memref<1x128xf32, #tpu.memory_space<vmem>>, %arg8: memref<128x128xbf16, #tpu.memory_space<vmem>>, %arg9: memref<1x128xf32, #tpu.memory_space<vmem>>, %arg10: memref<1x128xf32, #tpu.memory_space<vmem>>, %arg11: memref<1x128xf32, #tpu.memory_space<vmem>>, %arg12: memref<8x128xf32, #tpu.memory_space<vmem>>, %arg13: memref<128x128xf32, #tpu.memory_space<vmem>>, %arg14: memref<64x128xf32, #tpu.memory_space<vmem>>, %arg15: memref<8x128xf32, #tpu.memory_space<vmem>>) attributes {dimension_semantics = [#tpu.dimension_semantics<arbitrary>], iteration_bounds = array<i64: 2>, scalar_prefetch = 0 : i64, scratch_operands = 0 : i64, tpu.core_type = #tpu.core_type<tc>, window_params = [{transform_indices = @transform_0, window_bounds = array<i64: 1, 128>}, {transform_indices = @transform_1, window_bounds = array<i64: 1, 128>}, {transform_indices = @transform_2, window_bounds = array<i64: 128, 128>}, {transform_indices = @transform_3, window_bounds = array<i64: 128, 128>}, {transform_indices = @transform_4, window_bounds = array<i64: 1, 128, 128>}, {pipeline_mode = #tpu.pipeline_mode<synchronous>, transform_indices = @transform_5, window_bounds = array<i64: 64, 128>}, {pipeline_mode = #tpu.pipeline_mode<synchronous>, transform_indices = @transform_6, window_bounds = array<i64: 1, 128>}, {pipeline_mode = #tpu.pipeline_mode<synchronous>, transform_indices = @transform_7, window_bounds = array<i64: 128, 128>}, {pipeline_mode = #tpu.pipeline_mode<synchronous>, transform_indices = @transform_8, window_bounds = array<i64: 1, 128>}, {pipeline_mode = #tpu.pipeline_mode<synchronous>, transform_indices = @transform_9, window_bounds = array<i64: 1, 128>}, {pipeline_mode = #tpu.pipeline_mode<synchronous>, transform_indices = @transform_10, window_bounds = array<i64: 1, 128>}, {pipeline_mode = #tpu.pipeline_mode<synchronous>, transform_indices = @transform_11, window_bounds = array<i64: 8, 128>}, {pipeline_mode = #tpu.pipeline_mode<synchronous>, transform_indices = @transform_12, window_bounds = array<i64: 128, 128>}, {pipeline_mode = #tpu.pipeline_mode<synchronous>, transform_indices = @transform_13, window_bounds = array<i64: 64, 128>}, {pipeline_mode = #tpu.pipeline_mode<synchronous>, transform_indices = @transform_14, window_bounds = array<i64: 8, 128>}]} {
    %c0_i32 = arith.constant 0 : i32
    %0 = arith.cmpi eq, %arg0, %c0_i32 : i32
    %1 = arith.extui %0 : i1 to i32
    %c0_i32_0 = arith.constant 0 : i32
    %2 = arith.cmpi ne, %1, %c0_i32_0 : i32
    scf.if %2 {
      %cst_18 = arith.constant 0.000000e+00 : f32
      %28 = vector.broadcast %cst_18 : f32 to vector<64x128xf32>
      %c0_19 = arith.constant 0 : index
      %c0_20 = arith.constant 0 : index
      %29 = vector.load %arg14[%c0_19, %c0_20] : memref<64x128xf32, #tpu.memory_space<vmem>>, vector<64x128xf32>
      tpu.vector_store %arg14[%c0_19, %c0_20], %28 {strides = array<i32>} : memref<64x128xf32, #tpu.memory_space<vmem>>, vector<64x128xf32>,
    } else {
    }
    %c0 = arith.constant 0 : index
    %c0_1 = arith.constant 0 : index
    %3 = vector.load %arg3[%c0, %c0_1] : memref<128x128xbf16, #tpu.memory_space<vmem>>, vector<128x128xbf16>
    %4 = arith.extf %3 : vector<128x128xbf16> to vector<128x128xf32>
    %c0_2 = arith.constant 0 : index
    %c0_3 = arith.constant 0 : index
    %5 = vector.load %arg4[%c0_2, %c0_3] : memref<128x128xbf16, #tpu.memory_space<vmem>>, vector<128x128xbf16>
    %6 = arith.extf %5 : vector<128x128xbf16> to vector<128x128xf32>
    %7 = arith.mulf %4, %6 : vector<128x128xf32>
    %c0_4 = arith.constant 0 : index
    %c0_5 = arith.constant 0 : index
    %c0_6 = arith.constant 0 : index
    %8 = vector.load %arg5[%c0_4, %c0_5, %c0_6] : memref<1x128x128xbf16, #tpu.memory_space<vmem>>, vector<1x128x128xbf16>
    %9 = vector.shape_cast %8 : vector<1x128x128xbf16> to vector<128x128xbf16>
    %10 = arith.truncf %7 : vector<128x128xf32> to vector<128x128xbf16>
    %cst = arith.constant dense<0.000000e+00> : vector<128x128xf32>
    %11 = tpu.matmul %10, %9, %cst {dimension_numbers = #tpu.dot_dimension_numbers<[1], [0], [0], [1], [0, 0, 1, 1], [], []>} : vector<128x128xbf16>, vector<128x128xbf16>, vector<128x128xf32> -> vector<128x128xf32>
    %12 = tpu.iota {dimensions = array<i32: 0>} : vector<64x128xi32>
    %c0_7 = arith.constant 0 : index
    %c0_8 = arith.constant 0 : index
    %13 = vector.load %arg1[%c0_7, %c0_8] : memref<1x128xi32, #tpu.memory_space<vmem>>, vector<1x128xi32>
    %14 = vector.broadcast %13 : vector<1x128xi32> to vector<64x128xi32>
    %15 = arith.cmpi eq, %14, %12 : vector<64x128xi32>
    %c0_9 = arith.constant 0 : index
    %c0_10 = arith.constant 0 : index
    %16 = vector.load %arg2[%c0_9, %c0_10] : memref<1x128xf32, #tpu.memory_space<vmem>>, vector<1x128xf32>
    %cst_11 = arith.constant 0.000000e+00 : f32
    %17 = vector.shape_cast %16 : vector<1x128xf32> to vector<1x128xf32>
    %18 = vector.broadcast %17 : vector<1x128xf32> to vector<64x128xf32>
    %19 = vector.broadcast %cst_11 : f32 to vector<64x128xf32>
    %20 = arith.select %15, %18, %19 : vector<64x128xi1>, vector<64x128xf32>
    %c0_12 = arith.constant 0 : index
    %c0_13 = arith.constant 0 : index
    %21 = vector.load %arg14[%c0_12, %c0_13] : memref<64x128xf32, #tpu.memory_space<vmem>>, vector<64x128xf32>
    %cst_14 = arith.constant dense<0.000000e+00> : vector<64x128xf32>
    %22 = tpu.matmul %20, %11, %cst_14 {dimension_numbers = #tpu.dot_dimension_numbers<[1], [0], [0], [1], [0, 0, 1, 1], [], []>} : vector<64x128xf32>, vector<128x128xf32>, vector<64x128xf32> -> vector<64x128xf32>
    %23 = arith.addf %21, %22 : vector<64x128xf32>
    %c0_15 = arith.constant 0 : index
    %c0_16 = arith.constant 0 : index
    %24 = vector.load %arg14[%c0_15, %c0_16] : memref<64x128xf32, #tpu.memory_space<vmem>>, vector<64x128xf32>
    tpu.vector_store %arg14[%c0_15, %c0_16], %23 {strides = array<i32>} : memref<64x128xf32, #tpu.memory_space<vmem>>, vector<64x128xf32>,
    %c1_i32 = arith.constant 1 : i32
    %25 = arith.cmpi eq, %arg0, %c1_i32 : i32
    %26 = arith.extui %25 : i1 to i32
    %c0_i32_17 = arith.constant 0 : i32
    %27 = arith.cmpi ne, %26, %c0_i32_17 : i32
    scf.if %27 {
      %c0_18 = arith.constant 0 : index
      %c0_19 = arith.constant 0 : index
      %28 = vector.load %arg6[%c0_18, %c0_19] : memref<64x128xf32, #tpu.memory_space<vmem>>, vector<64x128xf32>
      %c0_20 = arith.constant 0 : index
      %c0_21 = arith.constant 0 : index
      %29 = vector.load %arg7[%c0_20, %c0_21] : memref<1x128xf32, #tpu.memory_space<vmem>>, vector<1x128xf32>
      %30 = vector.broadcast %29 : vector<1x128xf32> to vector<64x128xf32>
      %31 = arith.mulf %28, %30 : vector<64x128xf32>
      %32 = arith.truncf %31 : vector<64x128xf32> to vector<64x128xbf16>
      %c0_22 = arith.constant 0 : index
      %c0_23 = arith.constant 0 : index
      %33 = vector.load %arg8[%c0_22, %c0_23] : memref<128x128xbf16, #tpu.memory_space<vmem>>, vector<128x128xbf16>
      %cst_24 = arith.constant dense<0.000000e+00> : vector<64x128xf32>
      %34 = tpu.matmul %32, %33, %cst_24 {dimension_numbers = #tpu.dot_dimension_numbers<[1], [0], [0], [1], [0, 0, 1, 1], [], []>} : vector<64x128xbf16>, vector<128x128xbf16>, vector<64x128xf32> -> vector<64x128xf32>
      %c0_25 = arith.constant 0 : index
      %c0_26 = arith.constant 0 : index
      %35 = vector.load %arg14[%c0_25, %c0_26] : memref<64x128xf32, #tpu.memory_space<vmem>>, vector<64x128xf32>
      %cst_27 = arith.constant 3.000000e+00 : f32
      %36 = vector.broadcast %cst_27 : f32 to vector<64x128xf32>
      %37 = arith.divf %35, %36 : vector<64x128xf32>
      %cst_28 = arith.constant 3.000000e+00 : f32
      %38 = vector.broadcast %cst_28 : f32 to vector<64x128xf32>
      %39 = arith.divf %34, %38 : vector<64x128xf32>
      %40 = arith.addf %37, %39 : vector<64x128xf32>
      %c0_29 = arith.constant 0 : index
      %c0_30 = arith.constant 0 : index
      %41 = vector.load %arg9[%c0_29, %c0_30] : memref<1x128xf32, #tpu.memory_space<vmem>>, vector<1x128xf32>
      %42 = vector.broadcast %41 : vector<1x128xf32> to vector<64x128xf32>
      %43 = arith.addf %40, %42 : vector<64x128xf32>
      %cst_31 = arith.constant dense<0.000000e+00> : vector<128xf32>
      %44 = vector.multi_reduction <add>, %43, %cst_31 [0] : vector<64x128xf32> to vector<128xf32>
      %45 = vector.shape_cast %44 : vector<128xf32> to vector<1x128xf32>
      %cst_32 = arith.constant 6.400000e+01 : f32
      %46 = vector.broadcast %cst_32 : f32 to vector<1x128xf32>
      %47 = arith.divf %45, %46 : vector<1x128xf32>
      %48 = vector.broadcast %47 : vector<1x128xf32> to vector<64x128xf32>
      %49 = arith.subf %43, %48 : vector<64x128xf32>
      %50 = vector.broadcast %47 : vector<1x128xf32> to vector<64x128xf32>
      %51 = arith.subf %43, %50 : vector<64x128xf32>
      %52 = arith.mulf %49, %51 : vector<64x128xf32>
      %cst_33 = arith.constant dense<0.000000e+00> : vector<128xf32>
      %53 = vector.multi_reduction <add>, %52, %cst_33 [0] : vector<64x128xf32> to vector<128xf32>
      %54 = vector.shape_cast %53 : vector<128xf32> to vector<1x128xf32>
      %cst_34 = arith.constant 6.400000e+01 : f32
      %55 = vector.broadcast %cst_34 : f32 to vector<1x128xf32>
      %56 = arith.divf %54, %55 : vector<1x128xf32>
      %57 = vector.broadcast %47 : vector<1x128xf32> to vector<64x128xf32>
      %58 = arith.subf %43, %57 : vector<64x128xf32>
      %cst_35 = arith.constant 9.99999974E-6 : f32
      %59 = vector.broadcast %cst_35 : f32 to vector<1x128xf32>
      %60 = arith.addf %56, %59 : vector<1x128xf32>
      %61 = math.rsqrt %60 : vector<1x128xf32>
      %62 = vector.broadcast %61 : vector<1x128xf32> to vector<64x128xf32>
      %63 = arith.mulf %58, %62 : vector<64x128xf32>
      %c0_36 = arith.constant 0 : index
      %c0_37 = arith.constant 0 : index
      %64 = vector.load %arg10[%c0_36, %c0_37] : memref<1x128xf32, #tpu.memory_space<vmem>>, vector<1x128xf32>
      %65 = vector.broadcast %64 : vector<1x128xf32> to vector<64x128xf32>
      %66 = arith.mulf %63, %65 : vector<64x128xf32>
      %c0_38 = arith.constant 0 : index
      %c0_39 = arith.constant 0 : index
      %67 = vector.load %arg11[%c0_38, %c0_39] : memref<1x128xf32, #tpu.memory_space<vmem>>, vector<1x128xf32>
      %68 = vector.broadcast %67 : vector<1x128xf32> to vector<64x128xf32>
      %69 = arith.addf %66, %68 : vector<64x128xf32>
      %c0_40 = arith.constant 0 : index
      %c0_41 = arith.constant 0 : index
      %70 = vector.load %arg14[%c0_40, %c0_41] : memref<64x128xf32, #tpu.memory_space<vmem>>, vector<64x128xf32>
      tpu.vector_store %arg14[%c0_40, %c0_41], %69 {strides = array<i32>} : memref<64x128xf32, #tpu.memory_space<vmem>>, vector<64x128xf32>,
      %c0_42 = arith.constant 0 : index
      %c0_43 = arith.constant 0 : index
      %71 = vector.load %arg12[%c0_42, %c0_43] : memref<8x128xf32, #tpu.memory_space<vmem>>, vector<8x128xf32>
      %c0_44 = arith.constant 0 : index
      %c0_45 = arith.constant 0 : index
      %72 = vector.load %arg13[%c0_44, %c0_45] : memref<128x128xf32, #tpu.memory_space<vmem>>, vector<128x128xf32>
      %cst_46 = arith.constant dense<0.000000e+00> : vector<8x128xf32>
      %73 = tpu.matmul %71, %72, %cst_46 {dimension_numbers = #tpu.dot_dimension_numbers<[1], [0], [0], [1], [0, 0, 1, 1], [], []>} : vector<8x128xf32>, vector<128x128xf32>, vector<8x128xf32> -> vector<8x128xf32>
      %c0_47 = arith.constant 0 : index
      %c0_48 = arith.constant 0 : index
      %74 = vector.load %arg15[%c0_47, %c0_48] : memref<8x128xf32, #tpu.memory_space<vmem>>, vector<8x128xf32>
      tpu.vector_store %arg15[%c0_47, %c0_48], %73 {strides = array<i32>} : memref<8x128xf32, #tpu.memory_space<vmem>>, vector<8x128xf32>,
    } else {
    }
    return
  }
  func.func @transform_0(%arg0: i32) -> (i32, i32) {
    %c0_i32 = arith.constant 0 : i32
    %c0_i32_0 = arith.constant 0 : i32
    return %c0_i32, %arg0 : i32, i32
  }
  func.func @transform_1(%arg0: i32) -> (i32, i32) {
    %c0_i32 = arith.constant 0 : i32
    %c0_i32_0 = arith.constant 0 : i32
    return %c0_i32, %arg0 : i32, i32
  }
  func.func @transform_2(%arg0: i32) -> (i32, i32) {
    %c0_i32 = arith.constant 0 : i32
    %c0_i32_0 = arith.constant 0 : i32
    return %arg0, %c0_i32 : i32, i32
  }
  func.func @transform_3(%arg0: i32) -> (i32, i32) {
    %c0_i32 = arith.constant 0 : i32
    %c0_i32_0 = arith.constant 0 : i32
    return %arg0, %c0_i32 : i32, i32
  }
  func.func @transform_4(%arg0: i32) -> (i32, i32, i32) {
    %c1_i32 = arith.constant 1 : i32
    %0 = arith.cmpi sge, %arg0, %c1_i32 : i32
    %1 = arith.extui %0 : i1 to i32
    %c0_i32 = arith.constant 0 : i32
    %c0_i32_0 = arith.constant 0 : i32
    %c0_i32_1 = arith.constant 0 : i32
    return %1, %c0_i32, %c0_i32_0 : i32, i32, i32
  }
  func.func @transform_5(%arg0: i32) -> (i32, i32) {
    %c0_i32 = arith.constant 0 : i32
    %c0_i32_0 = arith.constant 0 : i32
    %c0_i32_1 = arith.constant 0 : i32
    return %c0_i32, %c0_i32_0 : i32, i32
  }
  func.func @transform_6(%arg0: i32) -> (i32, i32) {
    %c0_i32 = arith.constant 0 : i32
    %c0_i32_0 = arith.constant 0 : i32
    %c0_i32_1 = arith.constant 0 : i32
    return %c0_i32, %c0_i32_0 : i32, i32
  }
  func.func @transform_7(%arg0: i32) -> (i32, i32) {
    %c0_i32 = arith.constant 0 : i32
    %c0_i32_0 = arith.constant 0 : i32
    %c0_i32_1 = arith.constant 0 : i32
    return %c0_i32, %c0_i32_0 : i32, i32
  }
  func.func @transform_8(%arg0: i32) -> (i32, i32) {
    %c0_i32 = arith.constant 0 : i32
    %c0_i32_0 = arith.constant 0 : i32
    %c0_i32_1 = arith.constant 0 : i32
    return %c0_i32, %c0_i32_0 : i32, i32
  }
  func.func @transform_9(%arg0: i32) -> (i32, i32) {
    %c0_i32 = arith.constant 0 : i32
    %c0_i32_0 = arith.constant 0 : i32
    %c0_i32_1 = arith.constant 0 : i32
    return %c0_i32, %c0_i32_0 : i32, i32
  }
  func.func @transform_10(%arg0: i32) -> (i32, i32) {
    %c0_i32 = arith.constant 0 : i32
    %c0_i32_0 = arith.constant 0 : i32
    %c0_i32_1 = arith.constant 0 : i32
    return %c0_i32, %c0_i32_0 : i32, i32
  }
  func.func @transform_11(%arg0: i32) -> (i32, i32) {
    %c0_i32 = arith.constant 0 : i32
    %c0_i32_0 = arith.constant 0 : i32
    %c0_i32_1 = arith.constant 0 : i32
    return %c0_i32, %c0_i32_0 : i32, i32
  }
  func.func @transform_12(%arg0: i32) -> (i32, i32) {
    %c0_i32 = arith.constant 0 : i32
    %c0_i32_0 = arith.constant 0 : i32
    %c0_i32_1 = arith.constant 0 : i32
    return %c0_i32, %c0_i32_0 : i32, i32
  }
  func.func @transform_13(%arg0: i32) -> (i32, i32) {
    %c0_i32 = arith.constant 0 : i32
    %c0_i32_0 = arith.constant 0 : i32
    %c0_i32_1 = arith.constant 0 : i32
    return %c0_i32, %c0_i32_0 : i32, i32
  }
  func.func @transform_14(%arg0: i32) -> (i32, i32) {
    %c0_i32 = arith.constant 0 : i32
    %c0_i32_0 = arith.constant 0 : i32
    %c0_i32_1 = arith.constant 0 : i32
    return %c0_i32, %c0_i32_0 : i32, i32
  }
}

</mosaic_0001>

<llo_original>
// kernel: tpu_custom_call.1
$region0: #{tpu_custom_call.1}
  #allocation0 [shape = 'u32[]', space=smem, size = 0x4, offset = 0x4, fixed_abs, tag = 'smem constant byte address 0x4 - core index']
  #allocation1 [shape = 'u32[144,128]{1,0:T(1,128)}', space=vmem, size = 0x12000, scoped, tag = 'internal scratch']
  %s0 = inlined_call_operand.hbm [shape: s32[1,256], index: 0, kind: input, shape index: {}]
  %s1 = inlined_call_operand.vmem [shape: f32[1,256], index: 1, kind: input, shape index: {}]
  %s2 = inlined_call_operand.hbm [shape: bf16[256,128], index: 2, kind: input, shape index: {}]
  %s3 = inlined_call_operand.hbm [shape: bf16[256,128], index: 3, kind: input, shape index: {}]
  %s4 = inlined_call_operand.hbm [shape: bf16[2,128,128], index: 4, kind: input, shape index: {}]
  %s5 = inlined_call_operand.hbm [shape: f32[64,128], index: 5, kind: input, shape index: {}]
  %s6 = inlined_call_operand.vmem [shape: f32[1,128], index: 6, kind: input, shape index: {}]
  %s7 = inlined_call_operand.hbm [shape: bf16[128,128], index: 7, kind: input, shape index: {}]
  %s8 = inlined_call_operand.vmem [shape: f32[1,128], index: 8, kind: input, shape index: {}]
  %s9 = inlined_call_operand.vmem [shape: f32[1,128], index: 9, kind: input, shape index: {}]
  %s10 = inlined_call_operand.vmem [shape: f32[1,128], index: 10, kind: input, shape index: {}]
  %s11 = inlined_call_operand.vmem [shape: f32[8,128], index: 11, kind: input, shape index: {}]
  %s12 = inlined_call_operand.hbm [shape: f32[128,128], index: 12, kind: input, shape index: {}]
  %s13 = inlined_call_operand.hbm [shape: f32[64,128], index: 13, kind: output, shape index: {0}]
  %s14 = inlined_call_operand.hbm [shape: f32[8,128], index: 14, kind: output, shape index: {1}]
  %15 = xla_tuple %s13, %s14
  %s16 = sld [smem:[#allocation0]]
  $region129: #{tpu_custom_call.1} parent=0
    _
  %s18 = ssub.s32 1, %s16
  %s19 = scalar_select 0, %s18, %s16
  $region1: #{tpu_custom_call.1} parent=0
    #allocation2 [shape = 'u8[1024]{0}', space=vmem, size = 0x400, scoped, tag = 'input window, operand 0']
    #allocation3 [shape = 's32[2]{0}', space=sflag, size = 0x8, scoped, tag = 'scoped memory for tpu_custom_call.1']
    #allocation4 [shape = 's32[2]{0}', space=sflag, size = 0x8, scoped, tag = 'scoped memory for tpu_custom_call.1']
    #allocation5 [shape = 'u8[65536]{0}', space=vmem, size = 0x10000, scoped, tag = 'input window, operand 2']
    #allocation6 [shape = 's32[2]{0}', space=sflag, size = 0x8, scoped, tag = 'scoped memory for tpu_custom_call.1']
    #allocation7 [shape = 'u8[65536]{0}', space=vmem, size = 0x10000, scoped, tag = 'input window, operand 3']
    #allocation8 [shape = 'u8[65536]{0}', space=vmem, size = 0x10000, scoped, tag = 'input window, operand 4']
    #allocation9 [shape = 's32[2]{0}', space=sflag, size = 0x8, scoped, tag = 'scoped memory for tpu_custom_call.1']
    #allocation10 [shape = 'u8[32768]{0}', space=vmem, size = 0x8000, scoped, tag = 'input window, operand 5, single buffered']
    #allocation11 [shape = 'u8[32768]{0}', space=vmem, size = 0x8000, scoped, tag = 'input window, operand 7, single buffered']
    #allocation12 [shape = 's32[1]{0}', space=sflag, size = 0x4, scoped, tag = 'scoped memory for tpu_custom_call.1']
    #allocation13 [shape = 'u8[65536]{0}', space=vmem, size = 0x10000, scoped, tag = 'input window, operand 12, single buffered']
    #allocation14 [shape = 'u8[32768]{0}', space=vmem, size = 0x8000, scoped, tag = 'output window, operand 0, single buffered']
    #allocation15 [shape = 'u8[4096]{0}', space=vmem, size = 0x1000, scoped, tag = 'output window, operand 1, single buffered']
    #allocation16 [shape = 's32[1]{0}', space=sflag, size = 0x4, scoped, tag = 'scoped memory for tpu_custom_call.1']
    %20 = vsyncpa [#allocation3], 0
    %s21 = scalar_lea.sflag [#allocation3], 1
    %22 = vsyncpa %s21, 0
    %23 = vsyncpa [#allocation6], 0
    %s24 = scalar_lea.sflag [#allocation6], 1
    %25 = vsyncpa %s24, 0
    %26 = vsyncpa [#allocation9], 0
    %s27 = scalar_lea.sflag [#allocation9], 1
    %28 = vsyncpa %s27, 0
    %29 = vsyncpa [#allocation12], 0
    %30 = vsyncpa [#allocation4], 0
    %31 = vsyncpa [#allocation16], 0
    loop: start=0, step=1, limit=4
    $region2: #{tpu_custom_call.1} parent=1 // loop_pre_header
      _
    $region3: #{tpu_custom_call.1} parent=1 // loop_header
      %s33 = sphi 0, %s37
      %p34 = scmp.ge.s32.totalorder %s33, 4
      %s43 = sphi 0, %s45
      %s46 = sphi 0, %s43
      %s47 = sphi 0, %s46
      %s63 = sphi 0, %s47
      %s69 = sphi 0, %s71
      %s72 = sphi 0, %s69
      %s73 = sphi 0, %s72
      %s89 = sphi 0, %s73
      %s95 = sphi 0, %s97
      %s98 = sphi 0, %s95
      %s99 = sphi 0, %s98
      %s115 = sphi 0, %s99
      %s121 = sphi 0, %s123
      %s124 = sphi 0, %s121
      %s125 = sphi 0, %s124
      %s141 = sphi 0, %s125
      %s151 = sphi 0, %s153
      %s154 = sphi 0, %s151
      %s155 = sphi 0, %s154
      %s171 = sphi 0, %s155
      %s175 = sphi 0, %s175
      %s177 = sphi 0, %s175
      %s178 = sphi 0, %s177
      %s192 = sphi 0, %s178
      %s196 = sphi 0, %s196
      %s198 = sphi 0, %s196
      %s199 = sphi 0, %s198
      %s213 = sphi 0, %s199
      %s217 = sphi 0, %s217
      %s219 = sphi 0, %s217
      %s220 = sphi 0, %s219
      %s234 = sphi 0, %s220
      %s238 = sphi 0, %s238
      %s240 = sphi 0, %s238
      %s241 = sphi 0, %s240
      %s255 = sphi 0, %s241
      %s259 = sphi 0, %s259
      %s261 = sphi 0, %s259
      %s262 = sphi 0, %s261
      %s276 = sphi 0, %s262
      %s280 = sphi 0, %s280
      %s282 = sphi 0, %s280
      %s283 = sphi 0, %s282
      %s297 = sphi 0, %s283
      %s301 = sphi 0, %s301
      %s303 = sphi 0, %s301
      %s304 = sphi 0, %s303
      %s318 = sphi 0, %s304
      %s322 = sphi 0, %s322
      %s324 = sphi 0, %s322
      %s325 = sphi 0, %s324
      %s339 = sphi 0, %s325
      %s343 = sphi 0, %s343
      %s345 = sphi 0, %s343
      %s346 = sphi 0, %s345
      %s360 = sphi 0, %s346
      %s364 = sphi 0, %s364
      %s366 = sphi 0, %s364
      %s367 = sphi 0, %s366
      %s381 = sphi 0, %s367
    $region4: #{tpu_custom_call.1} parent=1 // loop_header_branch
      %36 = sbr.rel (%p34) target = $region8
    $region5: #{tpu_custom_call.1} parent=1 // loop_body
      %s38 = ssub.s32 %s33, 1
      %s39 = ssub.s32 %s33, 2
      %s40 = sadd.s32 %s33, 1
      %s41 = ssub.s32 %s33, %s40
      %p42 = scmp.eq.s32.totalorder %s41, 0
      %s44 = sadd.s32 %s43, 1
      %s45 = scalar_select %p42, %s43, %s44
      %p48 = pneg %p42
      %p49 = scmp.eq.s32.totalorder %s33, 1
      %p50 = por %p48, %p49
      %p51 = scmp.ne.s32.totalorder %s43, %s46
      %p52 = scmp.eq.s32.totalorder %s33, 0
      %p53 = por %p51, %p52
      %p54 = scmp.ne.s32.totalorder %s43, %s46
      %p55 = scmp.eq.s32.totalorder %s38, 1
      %p56 = por %p54, %p55
      %p57 = scmp.ne.s32.totalorder %s46, %s47
      %p58 = scmp.eq.s32.totalorder %s38, 0
      %p59 = por %p57, %p58
      %p60 = scmp.ne.s32.totalorder %s46, %s47
      %p61 = scmp.eq.s32.totalorder %s39, 1
      %p62 = por %p60, %p61
      %p64 = scmp.ne.s32.totalorder %s47, %s63
      %p65 = scmp.eq.s32.totalorder %s39, 0
      %p66 = por %p64, %p65
      %s67 = ssub.s32 %s33, %s40
      %p68 = scmp.eq.s32.totalorder %s67, 0
      %s70 = sadd.s32 %s69, 1
      %s71 = scalar_select %p68, %s69, %s70
      %p74 = pneg %p68
      %p75 = scmp.eq.s32.totalorder %s33, 1
      %p76 = por %p74, %p75
      %p77 = scmp.ne.s32.totalorder %s69, %s72
      %p78 = scmp.eq.s32.totalorder %s33, 0
      %p79 = por %p77, %p78
      %p80 = scmp.ne.s32.totalorder %s69, %s72
      %p81 = scmp.eq.s32.totalorder %s38, 1
      %p82 = por %p80, %p81
      %p83 = scmp.ne.s32.totalorder %s72, %s73
      %p84 = scmp.eq.s32.totalorder %s38, 0
      %p85 = por %p83, %p84
      %p86 = scmp.ne.s32.totalorder %s72, %s73
      %p87 = scmp.eq.s32.totalorder %s39, 1
      %p88 = por %p86, %p87
      %p90 = scmp.ne.s32.totalorder %s73, %s89
      %p91 = scmp.eq.s32.totalorder %s39, 0
      %p92 = por %p90, %p91
      %s93 = ssub.s32 %s33, %s40
      %p94 = scmp.eq.s32.totalorder %s93, 0
      %s96 = sadd.s32 %s95, 1
      %s97 = scalar_select %p94, %s95, %s96
      %p100 = pneg %p94
      %p101 = scmp.eq.s32.totalorder %s33, 1
      %p102 = por %p100, %p101
      %p103 = scmp.ne.s32.totalorder %s95, %s98
      %p104 = scmp.eq.s32.totalorder %s33, 0
      %p105 = por %p103, %p104
      %p106 = scmp.ne.s32.totalorder %s95, %s98
      %p107 = scmp.eq.s32.totalorder %s38, 1
      %p108 = por %p106, %p107
      %p109 = scmp.ne.s32.totalorder %s98, %s99
      %p110 = scmp.eq.s32.totalorder %s38, 0
      %p111 = por %p109, %p110
      %p112 = scmp.ne.s32.totalorder %s98, %s99
      %p113 = scmp.eq.s32.totalorder %s39, 1
      %p114 = por %p112, %p113
      %p116 = scmp.ne.s32.totalorder %s99, %s115
      %p117 = scmp.eq.s32.totalorder %s39, 0
      %p118 = por %p116, %p117
      %s119 = ssub.s32 %s33, %s40
      %p120 = scmp.eq.s32.totalorder %s119, 0
      %s122 = sadd.s32 %s121, 1
      %s123 = scalar_select %p120, %s121, %s122
      %p126 = pneg %p120
      %p127 = scmp.eq.s32.totalorder %s33, 1
      %p128 = por %p126, %p127
      %p129 = scmp.ne.s32.totalorder %s121, %s124
      %p130 = scmp.eq.s32.totalorder %s33, 0
      %p131 = por %p129, %p130
      %p132 = scmp.ne.s32.totalorder %s121, %s124
      %p133 = scmp.eq.s32.totalorder %s38, 1
      %p134 = por %p132, %p133
      %p135 = scmp.ne.s32.totalorder %s124, %s125
      %p136 = scmp.eq.s32.totalorder %s38, 0
      %p137 = por %p135, %p136
      %p138 = scmp.ne.s32.totalorder %s124, %s125
      %p139 = scmp.eq.s32.totalorder %s39, 1
      %p140 = por %p138, %p139
      %p142 = scmp.ne.s32.totalorder %s125, %s141
      %p143 = scmp.eq.s32.totalorder %s39, 0
      %p144 = por %p142, %p143
      %p145 = scmp.ge.s32.totalorder %s33, 1
      %s146 = scalar_select %p145, 1, 0
      %p147 = scmp.ge.s32.totalorder %s40, 1
      %s148 = scalar_select %p147, 1, 0
      %s149 = ssub.s32 %s146, %s148
      %p150 = scmp.eq.s32.totalorder %s149, 0
      %s152 = sadd.s32 %s151, 1
      %s153 = scalar_select %p150, %s151, %s152
      %p156 = pneg %p150
      %p157 = scmp.eq.s32.totalorder %s33, 1
      %p158 = por %p156, %p157
      %p159 = scmp.ne.s32.totalorder %s151, %s154
      %p160 = scmp.eq.s32.totalorder %s33, 0
      %p161 = por %p159, %p160
      %p162 = scmp.ne.s32.totalorder %s151, %s154
      %p163 = scmp.eq.s32.totalorder %s38, 1
      %p164 = por %p162, %p163
      %p165 = scmp.ne.s32.totalorder %s154, %s155
      %p166 = scmp.eq.s32.totalorder %s38, 0
      %p167 = por %p165, %p166
      %p168 = scmp.ne.s32.totalorder %s154, %s155
      %p169 = scmp.eq.s32.totalorder %s39, 1
      %p170 = por %p168, %p169
      %p172 = scmp.ne.s32.totalorder %s155, %s171
      %p173 = scmp.eq.s32.totalorder %s39, 0
      %p174 = por %p172, %p173
      %s176 = sadd.s32 %s175, 1
      %p179 = scmp.eq.s32.totalorder %s33, 1
      %p180 = scmp.ne.s32.totalorder %s175, %s177
      %p181 = scmp.eq.s32.totalorder %s33, 0
      %p182 = por %p180, %p181
      %p183 = scmp.ne.s32.totalorder %s175, %s177
      %p184 = scmp.eq.s32.totalorder %s38, 1
      %p185 = por %p183, %p184
      %p186 = scmp.ne.s32.totalorder %s177, %s178
      %p187 = scmp.eq.s32.totalorder %s38, 0
      %p188 = por %p186, %p187
      %p189 = scmp.ne.s32.totalorder %s177, %s178
      %p190 = scmp.eq.s32.totalorder %s39, 1
      %p191 = por %p189, %p190
      %p193 = scmp.ne.s32.totalorder %s178, %s192
      %p194 = scmp.eq.s32.totalorder %s39, 0
      %p195 = por %p193, %p194
      %s197 = sadd.s32 %s196, 1
      %p200 = scmp.eq.s32.totalorder %s33, 1
      %p201 = scmp.ne.s32.totalorder %s196, %s198
      %p202 = scmp.eq.s32.totalorder %s33, 0
      %p203 = por %p201, %p202
      %p204 = scmp.ne.s32.totalorder %s196, %s198
      %p205 = scmp.eq.s32.totalorder %s38, 1
      %p206 = por %p204, %p205
      %p207 = scmp.ne.s32.totalorder %s198, %s199
      %p208 = scmp.eq.s32.totalorder %s38, 0
      %p209 = por %p207, %p208
      %p210 = scmp.ne.s32.totalorder %s198, %s199
      %p211 = scmp.eq.s32.totalorder %s39, 1
      %p212 = por %p210, %p211
      %p214 = scmp.ne.s32.totalorder %s199, %s213
      %p215 = scmp.eq.s32.totalorder %s39, 0
      %p216 = por %p214, %p215
      %s218 = sadd.s32 %s217, 1
      %p221 = scmp.eq.s32.totalorder %s33, 1
      %p222 = scmp.ne.s32.totalorder %s217, %s219
      %p223 = scmp.eq.s32.totalorder %s33, 0
      %p224 = por %p222, %p223
      %p225 = scmp.ne.s32.totalorder %s217, %s219
      %p226 = scmp.eq.s32.totalorder %s38, 1
      %p227 = por %p225, %p226
      %p228 = scmp.ne.s32.totalorder %s219, %s220
      %p229 = scmp.eq.s32.totalorder %s38, 0
      %p230 = por %p228, %p229
      %p231 = scmp.ne.s32.totalorder %s219, %s220
      %p232 = scmp.eq.s32.totalorder %s39, 1
      %p233 = por %p231, %p232
      %p235 = scmp.ne.s32.totalorder %s220, %s234
      %p236 = scmp.eq.s32.totalorder %s39, 0
      %p237 = por %p235, %p236
      %s239 = sadd.s32 %s238, 1
      %p242 = scmp.eq.s32.totalorder %s33, 1
      %p243 = scmp.ne.s32.totalorder %s238, %s240
      %p244 = scmp.eq.s32.totalorder %s33, 0
      %p245 = por %p243, %p244
      %p246 = scmp.ne.s32.totalorder %s238, %s240
      %p247 = scmp.eq.s32.totalorder %s38, 1
      %p248 = por %p246, %p247
      %p249 = scmp.ne.s32.totalorder %s240, %s241
      %p250 = scmp.eq.s32.totalorder %s38, 0
      %p251 = por %p249, %p250
      %p252 = scmp.ne.s32.totalorder %s240, %s241
      %p253 = scmp.eq.s32.totalorder %s39, 1
      %p254 = por %p252, %p253
      %p256 = scmp.ne.s32.totalorder %s241, %s255
      %p257 = scmp.eq.s32.totalorder %s39, 0
      %p258 = por %p256, %p257
      %s260 = sadd.s32 %s259, 1
      %p263 = scmp.eq.s32.totalorder %s33, 1
      %p264 = scmp.ne.s32.totalorder %s259, %s261
      %p265 = scmp.eq.s32.totalorder %s33, 0
      %p266 = por %p264, %p265
      %p267 = scmp.ne.s32.totalorder %s259, %s261
      %p268 = scmp.eq.s32.totalorder %s38, 1
      %p269 = por %p267, %p268
      %p270 = scmp.ne.s32.totalorder %s261, %s262
      %p271 = scmp.eq.s32.totalorder %s38, 0
      %p272 = por %p270, %p271
      %p273 = scmp.ne.s32.totalorder %s261, %s262
      %p274 = scmp.eq.s32.totalorder %s39, 1
      %p275 = por %p273, %p274
      %p277 = scmp.ne.s32.totalorder %s262, %s276
      %p278 = scmp.eq.s32.totalorder %s39, 0
      %p279 = por %p277, %p278
      %s281 = sadd.s32 %s280, 1
      %p284 = scmp.eq.s32.totalorder %s33, 1
      %p285 = scmp.ne.s32.totalorder %s280, %s282
      %p286 = scmp.eq.s32.totalorder %s33, 0
      %p287 = por %p285, %p286
      %p288 = scmp.ne.s32.totalorder %s280, %s282
      %p289 = scmp.eq.s32.totalorder %s38, 1
      %p290 = por %p288, %p289
      %p291 = scmp.ne.s32.totalorder %s282, %s283
      %p292 = scmp.eq.s32.totalorder %s38, 0
      %p293 = por %p291, %p292
      %p294 = scmp.ne.s32.totalorder %s282, %s283
      %p295 = scmp.eq.s32.totalorder %s39, 1
      %p296 = por %p294, %p295
      %p298 = scmp.ne.s32.totalorder %s283, %s297
      %p299 = scmp.eq.s32.totalorder %s39, 0
      %p300 = por %p298, %p299
      %s302 = sadd.s32 %s301, 1
      %p305 = scmp.eq.s32.totalorder %s33, 1
      %p306 = scmp.ne.s32.totalorder %s301, %s303
      %p307 = scmp.eq.s32.totalorder %s33, 0
      %p308 = por %p306, %p307
      %p309 = scmp.ne.s32.totalorder %s301, %s303
      %p310 = scmp.eq.s32.totalorder %s38, 1
      %p311 = por %p309, %p310
      %p312 = scmp.ne.s32.totalorder %s303, %s304
      %p313 = scmp.eq.s32.totalorder %s38, 0
      %p314 = por %p312, %p313
      %p315 = scmp.ne.s32.totalorder %s303, %s304
      %p316 = scmp.eq.s32.totalorder %s39, 1
      %p317 = por %p315, %p316
      %p319 = scmp.ne.s32.totalorder %s304, %s318
      %p320 = scmp.eq.s32.totalorder %s39, 0
      %p321 = por %p319, %p320
      %s323 = sadd.s32 %s322, 1
      %p326 = scmp.eq.s32.totalorder %s33, 1
      %p327 = scmp.ne.s32.totalorder %s322, %s324
      %p328 = scmp.eq.s32.totalorder %s33, 0
      %p329 = por %p327, %p328
      %p330 = scmp.ne.s32.totalorder %s322, %s324
      %p331 = scmp.eq.s32.totalorder %s38, 1
      %p332 = por %p330, %p331
      %p333 = scmp.ne.s32.totalorder %s324, %s325
      %p334 = scmp.eq.s32.totalorder %s38, 0
      %p335 = por %p333, %p334
      %p336 = scmp.ne.s32.totalorder %s324, %s325
      %p337 = scmp.eq.s32.totalorder %s39, 1
      %p338 = por %p336, %p337
      %p340 = scmp.ne.s32.totalorder %s325, %s339
      %p341 = scmp.eq.s32.totalorder %s39, 0
      %p342 = por %p340, %p341
      %s344 = sadd.s32 %s343, 1
      %p347 = scmp.eq.s32.totalorder %s33, 1
      %p348 = scmp.ne.s32.totalorder %s343, %s345
      %p349 = scmp.eq.s32.totalorder %s33, 0
      %p350 = por %p348, %p349
      %p351 = scmp.ne.s32.totalorder %s343, %s345
      %p352 = scmp.eq.s32.totalorder %s38, 1
      %p353 = por %p351, %p352
      %p354 = scmp.ne.s32.totalorder %s345, %s346
      %p355 = scmp.eq.s32.totalorder %s38, 0
      %p356 = por %p354, %p355
      %p357 = scmp.ne.s32.totalorder %s345, %s346
      %p358 = scmp.eq.s32.totalorder %s39, 1
      %p359 = por %p357, %p358
      %p361 = scmp.ne.s32.totalorder %s346, %s360
      %p362 = scmp.eq.s32.totalorder %s39, 0
      %p363 = por %p361, %p362
      %s365 = sadd.s32 %s364, 1
      %p368 = scmp.eq.s32.totalorder %s33, 1
      %p369 = scmp.ne.s32.totalorder %s364, %s366
      %p370 = scmp.eq.s32.totalorder %s33, 0
      %p371 = por %p369, %p370
      %p372 = scmp.ne.s32.totalorder %s364, %s366
      %p373 = scmp.eq.s32.totalorder %s38, 1
      %p374 = por %p372, %p373
      %p375 = scmp.ne.s32.totalorder %s366, %s367
      %p376 = scmp.eq.s32.totalorder %s38, 0
      %p377 = por %p375, %p376
      %p378 = scmp.ne.s32.totalorder %s366, %s367
      %p379 = scmp.eq.s32.totalorder %s39, 1
      %p380 = por %p378, %p379
      %p382 = scmp.ne.s32.totalorder %s367, %s381
      %p383 = scmp.eq.s32.totalorder %s39, 0
      %p384 = por %p382, %p383
      %p385 = scmp.le.s32.totalorder 1, %s33
      %p386 = scmp.lt.s32.totalorder %s33, 3
      %p387 = pnand %p385, %p386
      %p388 = pneg %p387
      // Predicated region
      $region9: #{tpu_custom_call.1} parent=5 // pred_check
        _
      $region10: #{tpu_custom_call.1} parent=5 // pred_check_branch
        %390 = sbr.rel (%p387) target = $region12
      $region11: #{tpu_custom_call.1} parent=5 // pred_region
        %s391 = ssub.s32 %s33, 1
        // Predicated region
        $region13: #{tpu_custom_call.1} parent=11 // pred_check
          %p392 = pneg %p188
        $region14: #{tpu_custom_call.1} parent=11 // pred_check_branch
          %394 = sbr.rel (%p392) target = $region16
        $region15: #{tpu_custom_call.1} parent=11 // pred_region
          %s396 = ssub.s32 1024, 1024
          %397 = vsyncadd [#allocation9], %s396
          %s398 = sshll.u32 [#allocation10], 4
          %s399 = int_to_ptr.vmem [resolvable:$true] %s398
          %404 = dma.hbm_to_vmem [thread:$0]  %s5, 1024, %s399, [#allocation9], 128, 128, 8
        $region16: #{tpu_custom_call.1} parent=11 // pred_fallthru
          _
        // Predicated region
        $region17: #{tpu_custom_call.1} parent=11 // pred_check
          %p405 = pneg %p209
        $region18: #{tpu_custom_call.1} parent=11 // pred_check_branch
          %407 = sbr.rel (%p405) target = $region20
        $region19: #{tpu_custom_call.1} parent=11 // pred_region
          _
        $region20: #{tpu_custom_call.1} parent=11 // pred_fallthru
          _
        // Predicated region
        $region21: #{tpu_custom_call.1} parent=11 // pred_check
          %p408 = pneg %p230
        $region22: #{tpu_custom_call.1} parent=11 // pred_check_branch
          %410 = sbr.rel (%p408) target = $region24
        $region23: #{tpu_custom_call.1} parent=11 // pred_region
          %s412 = ssub.s32 1024, 1024
          %413 = vsyncadd [#allocation12], %s412
          %s414 = sshll.u32 [#allocation11], 4
          %s415 = int_to_ptr.vmem [resolvable:$true] %s414
          %420 = dma.hbm_to_vmem [thread:$0]  %s7, 1024, %s415, [#allocation12], 64, 64, 4
        $region24: #{tpu_custom_call.1} parent=11 // pred_fallthru
          _
        // Predicated region
        $region25: #{tpu_custom_call.1} parent=11 // pred_check
          %p421 = pneg %p251
        $region26: #{tpu_custom_call.1} parent=11 // pred_check_branch
          %423 = sbr.rel (%p421) target = $region28
        $region27: #{tpu_custom_call.1} parent=11 // pred_region
          _
        $region28: #{tpu_custom_call.1} parent=11 // pred_fallthru
          _
        // Predicated region
        $region29: #{tpu_custom_call.1} parent=11 // pred_check
          %p424 = pneg %p272
        $region30: #{tpu_custom_call.1} parent=11 // pred_check_branch
          %426 = sbr.rel (%p424) target = $region32
        $region31: #{tpu_custom_call.1} parent=11 // pred_region
          _
        $region32: #{tpu_custom_call.1} parent=11 // pred_fallthru
          _
        // Predicated region
        $region33: #{tpu_custom_call.1} parent=11 // pred_check
          %p427 = pneg %p293
        $region34: #{tpu_custom_call.1} parent=11 // pred_check_branch
          %429 = sbr.rel (%p427) target = $region36
        $region35: #{tpu_custom_call.1} parent=11 // pred_region
          _
        $region36: #{tpu_custom_call.1} parent=11 // pred_fallthru
          _
        // Predicated region
        $region37: #{tpu_custom_call.1} parent=11 // pred_check
          %p430 = pneg %p314
        $region38: #{tpu_custom_call.1} parent=11 // pred_check_branch
          %432 = sbr.rel (%p430) target = $region40
        $region39: #{tpu_custom_call.1} parent=11 // pred_region
          _
        $region40: #{tpu_custom_call.1} parent=11 // pred_fallthru
          _
        // Predicated region
        $region41: #{tpu_custom_call.1} parent=11 // pred_check
          %p433 = pneg %p335
        $region42: #{tpu_custom_call.1} parent=11 // pred_check_branch
          %435 = sbr.rel (%p433) target = $region44
        $region43: #{tpu_custom_call.1} parent=11 // pred_region
          %s437 = ssub.s32 2048, 2048
          %438 = vsyncadd [#allocation12], %s437
          %s439 = sshll.u32 [#allocation13], 4
          %s440 = int_to_ptr.vmem [resolvable:$true] %s439
          %445 = dma.hbm_to_vmem [thread:$0]  %s12, 2048, %s440, [#allocation12], 128, 128, 8
        $region44: #{tpu_custom_call.1} parent=11 // pred_fallthru
          _
      $region12: #{tpu_custom_call.1} parent=5 // pred_fallthru
        _
      %p446 = scmp.lt.s32.totalorder %s33, 2
      // Predicated region
      $region45: #{tpu_custom_call.1} parent=5 // pred_check
        %p447 = pneg %p446
      $region46: #{tpu_custom_call.1} parent=5 // pred_check_branch
        %449 = sbr.rel (%p447) target = $region48
      $region47: #{tpu_custom_call.1} parent=5 // pred_region
        // Predicated region
        $region49: #{tpu_custom_call.1} parent=47 // pred_check
          %p450 = pneg %p53
        $region50: #{tpu_custom_call.1} parent=47 // pred_check_branch
          %452 = sbr.rel (%p450) target = $region52
        $region51: #{tpu_custom_call.1} parent=47 // pred_region
          %s453 = sand.u32 %s43, 1
          %s454 = scalar_lea.sflag [#allocation3], %s453
          %s455 = sand.u32 %s43, 1
          %s456 = scalar_lea.vmem [#allocation2], %s455
          %s458 = ssub.s32 16, 16
          %459 = vsyncadd %s454, %s458
          %s460 = smul.addr %s33, 16
          %s461 = scalar_lea.hbm %s0, %s460
          %s463 = sshll.u32 %s456, 4
          %s464 = int_to_ptr.vmem [resolvable:$true] %s463
          %466 = dma.hbm_to_vmem [thread:$0]  %s461, 16, %s464, %s454
        $region52: #{tpu_custom_call.1} parent=47 // pred_fallthru
          _
        // Predicated region
        $region53: #{tpu_custom_call.1} parent=47 // pred_check
          %p467 = pneg %p79
        $region54: #{tpu_custom_call.1} parent=47 // pred_check_branch
          %469 = sbr.rel (%p467) target = $region56
        $region55: #{tpu_custom_call.1} parent=47 // pred_region
          %p470 = scmp.lt.s32.totalorder %s33, 1
          %s471 = scalar_select %p470, %s33, 1
          %s472 = scalar_lea.vmem %s1, %s471
        $region56: #{tpu_custom_call.1} parent=47 // pred_fallthru
          _
        // Predicated region
        $region57: #{tpu_custom_call.1} parent=47 // pred_check
          %p473 = pneg %p105
        $region58: #{tpu_custom_call.1} parent=47 // pred_check_branch
          %475 = sbr.rel (%p473) target = $region60
        $region59: #{tpu_custom_call.1} parent=47 // pred_region
          %s476 = sand.u32 %s33, 1
          %s477 = scalar_lea.sflag [#allocation6], %s476
          %s478 = sand.u32 %s95, 1
          %s479 = smul.addr %s478, 64
          %s480 = scalar_lea.vmem [#allocation5], %s479
          %s481 = smul.u32 16, %s33
          %s483 = ssub.s32 1024, 1024
          %484 = vsyncadd %s477, %s483
          %s485 = smul.addr %s481, 64
          %s486 = scalar_lea.hbm %s2, %s485
          %s487 = sshll.u32 %s480, 4
          %s488 = int_to_ptr.vmem [resolvable:$true] %s487
          %493 = dma.hbm_to_vmem [thread:$0]  %s486, 1024, %s488, %s477, 64, 64, 4
        $region60: #{tpu_custom_call.1} parent=47 // pred_fallthru
          _
        // Predicated region
        $region61: #{tpu_custom_call.1} parent=47 // pred_check
          %p494 = pneg %p131
        $region62: #{tpu_custom_call.1} parent=47 // pred_check_branch
          %496 = sbr.rel (%p494) target = $region64
        $region63: #{tpu_custom_call.1} parent=47 // pred_region
          %s497 = sand.u32 %s33, 1
          %s498 = scalar_lea.sflag [#allocation6], %s497
          %s499 = sand.u32 %s121, 1
          %s500 = smul.addr %s499, 64
          %s501 = scalar_lea.vmem [#allocation7], %s500
          %s502 = smul.u32 16, %s33
          %s504 = ssub.s32 1024, 1024
          %505 = vsyncadd %s498, %s504
          %s506 = smul.addr %s502, 64
          %s507 = scalar_lea.hbm %s3, %s506
          %s508 = sshll.u32 %s501, 4
          %s509 = int_to_ptr.vmem [resolvable:$true] %s508
          %514 = dma.hbm_to_vmem [thread:$0]  %s507, 1024, %s509, %s498, 64, 64, 4
        $region64: #{tpu_custom_call.1} parent=47 // pred_fallthru
          _
        // Predicated region
        $region65: #{tpu_custom_call.1} parent=47 // pred_check
          %p515 = pneg %p161
        $region66: #{tpu_custom_call.1} parent=47 // pred_check_branch
          %517 = sbr.rel (%p515) target = $region68
        $region67: #{tpu_custom_call.1} parent=47 // pred_region
          %s518 = sand.u32 %s33, 1
          %s519 = scalar_lea.sflag [#allocation9], %s518
          %s520 = sand.u32 %s151, 1
          %s521 = smul.addr %s520, 64
          %s522 = scalar_lea.vmem [#allocation8], %s521
          %p523 = scmp.ge.s32.totalorder %s33, 1
          %s524 = scalar_select %p523, 1, 0
          %s526 = ssub.s32 1024, 1024
          %527 = vsyncadd %s519, %s526
          %s528 = smul.addr %s524, 16
          %s529 = smul.addr %s528, 64
          %s530 = scalar_lea.hbm %s4, %s529
          %s531 = sshll.u32 %s522, 4
          %s532 = int_to_ptr.vmem [resolvable:$true] %s531
          %537 = dma.hbm_to_vmem [thread:$0]  %s530, 1024, %s532, %s519, 64, 64, 4
        $region68: #{tpu_custom_call.1} parent=47 // pred_fallthru
          _
      $region48: #{tpu_custom_call.1} parent=5 // pred_fallthru
        _
      %p538 = scmp.le.s32.totalorder 1, %s33
      %p539 = scmp.lt.s32.totalorder %s33, 3
      %p540 = pnand %p538, %p539
      %p541 = pneg %p540
      // Predicated region
      $region69: #{tpu_custom_call.1} parent=5 // pred_check
        _
      $region70: #{tpu_custom_call.1} parent=5 // pred_check_branch
        %543 = sbr.rel (%p540) target = $region72
      $region71: #{tpu_custom_call.1} parent=5 // pred_region
        %s544 = ssub.s32 %s33, 1
        %s545 = sand.u32 %s46, 1
        %s546 = scalar_lea.sflag [#allocation3], %s545
        %s547 = sand.u32 %s46, 1
        %s548 = scalar_lea.vmem [#allocation2], %s547
        // Predicated region
        $region73: #{tpu_custom_call.1} parent=71 // pred_check
          %p549 = pneg %p59
        $region74: #{tpu_custom_call.1} parent=71 // pred_check_branch
          %551 = sbr.rel (%p549) target = $region76
        $region75: #{tpu_custom_call.1} parent=71 // pred_region
          %552 = dma.done %s546, 16
        $region76: #{tpu_custom_call.1} parent=71 // pred_fallthru
          _
        %s553 = sand.u32 %s38, 1
        %s554 = scalar_lea.sflag [#allocation6], %s553
        %s555 = sand.u32 %s98, 1
        %s556 = smul.addr %s555, 64
        %s557 = scalar_lea.vmem [#allocation5], %s556
        // Predicated region
        $region77: #{tpu_custom_call.1} parent=71 // pred_check
          %p558 = pneg %p111
        $region78: #{tpu_custom_call.1} parent=71 // pred_check_branch
          %560 = sbr.rel (%p558) target = $region80
        $region79: #{tpu_custom_call.1} parent=71 // pred_region
          %561 = dma.done %s554, 1024
        $region80: #{tpu_custom_call.1} parent=71 // pred_fallthru
          _
        %s562 = sand.u32 %s38, 1
        %s563 = scalar_lea.sflag [#allocation6], %s562
        %s564 = sand.u32 %s124, 1
        %s565 = smul.addr %s564, 64
        %s566 = scalar_lea.vmem [#allocation7], %s565
        // Predicated region
        $region81: #{tpu_custom_call.1} parent=71 // pred_check
          %p567 = pneg %p137
        $region82: #{tpu_custom_call.1} parent=71 // pred_check_branch
          %569 = sbr.rel (%p567) target = $region84
        $region83: #{tpu_custom_call.1} parent=71 // pred_region
          %570 = dma.done %s563, 1024
        $region84: #{tpu_custom_call.1} parent=71 // pred_fallthru
          _
        %s571 = sand.u32 %s38, 1
        %s572 = scalar_lea.sflag [#allocation9], %s571
        %s573 = sand.u32 %s154, 1
        %s574 = smul.addr %s573, 64
        %s575 = scalar_lea.vmem [#allocation8], %s574
        // Predicated region
        $region85: #{tpu_custom_call.1} parent=71 // pred_check
          %p576 = pneg %p167
        $region86: #{tpu_custom_call.1} parent=71 // pred_check_branch
          %578 = sbr.rel (%p576) target = $region88
        $region87: #{tpu_custom_call.1} parent=71 // pred_region
          %579 = dma.done %s572, 1024
        $region88: #{tpu_custom_call.1} parent=71 // pred_fallthru
          _
        // Predicated region
        $region89: #{tpu_custom_call.1} parent=71 // pred_check
          %p580 = pneg %p188
        $region90: #{tpu_custom_call.1} parent=71 // pred_check_branch
          %582 = sbr.rel (%p580) target = $region92
        $region91: #{tpu_custom_call.1} parent=71 // pred_region
          %583 = dma.done [#allocation9], 1024
        $region92: #{tpu_custom_call.1} parent=71 // pred_fallthru
          _
        // Predicated region
        $region93: #{tpu_custom_call.1} parent=71 // pred_check
          %p584 = pneg %p230
        $region94: #{tpu_custom_call.1} parent=71 // pred_check_branch
          %586 = sbr.rel (%p584) target = $region96
        $region95: #{tpu_custom_call.1} parent=71 // pred_region
          %587 = dma.done [#allocation12], 1024
        $region96: #{tpu_custom_call.1} parent=71 // pred_fallthru
          _
        // Predicated region
        $region97: #{tpu_custom_call.1} parent=71 // pred_check
          %p588 = pneg %p335
        $region98: #{tpu_custom_call.1} parent=71 // pred_check_branch
          %590 = sbr.rel (%p588) target = $region100
        $region99: #{tpu_custom_call.1} parent=71 // pred_region
          %591 = dma.done [#allocation12], 2048
        $region100: #{tpu_custom_call.1} parent=71 // pred_fallthru
          _
        %s592 = sand.u32 %s46, 1
        %s593 = scalar_lea.sflag [#allocation3], %s592
        %s594 = sand.u32 %s46, 1
        %s595 = scalar_lea.vmem [#allocation2], %s594
        %p596 = pneg %p59
        %p597 = pneg %p56
        %p598 = scmp.lt.s32.totalorder %s38, 1
        %s599 = scalar_select %p598, %s38, 1
        %s600 = scalar_lea.vmem %s1, %s599
        %p601 = pneg %p85
        %p602 = pneg %p82
        %s603 = sand.u32 %s38, 1
        %s604 = scalar_lea.sflag [#allocation6], %s603
        %s605 = sand.u32 %s98, 1
        %s606 = smul.addr %s605, 64
        %s607 = scalar_lea.vmem [#allocation5], %s606
        %p608 = pneg %p111
        %p609 = pneg %p108
        %s610 = sand.u32 %s38, 1
        %s611 = scalar_lea.sflag [#allocation6], %s610
        %s612 = sand.u32 %s124, 1
        %s613 = smul.addr %s612, 64
        %s614 = scalar_lea.vmem [#allocation7], %s613
        %p615 = pneg %p137
        %p616 = pneg %p134
        %s617 = sand.u32 %s38, 1
        %s618 = scalar_lea.sflag [#allocation9], %s617
        %s619 = sand.u32 %s154, 1
        %s620 = smul.addr %s619, 64
        %s621 = scalar_lea.vmem [#allocation8], %s620
        %p622 = pneg %p167
        %p623 = pneg %p164
        %p624 = pneg %p188
        %p625 = pneg %p185
        %p626 = pneg %p209
        %p627 = pneg %p206
        %p628 = pneg %p230
        %p629 = pneg %p227
        %p630 = pneg %p251
        %p631 = pneg %p248
        %p632 = pneg %p272
        %p633 = pneg %p269
        %p634 = pneg %p293
        %p635 = pneg %p290
        %p636 = pneg %p314
        %p637 = pneg %p311
        %p638 = pneg %p335
        %p639 = pneg %p332
        %p640 = pneg %p356
        %p641 = pneg %p353
        %p642 = pneg %p377
        %p643 = pneg %p374
        %p644 = scmp.lt.s32.totalorder %s38, 1
        %s645 = scalar_select %p644, %s38, 1
        %s646 = scalar_lea.vmem %s1, %s645
        %s647 = smul.u32 16, %s38
        %s648 = smul.u32 16, %s38
        %p649 = scmp.ge.s32.totalorder %s38, 1
        %s650 = scalar_select %p649, 1, 0
        %p652 = scmp.eq.s32.totalorder %s38, 0
        // Predicated region
        $region101: #{tpu_custom_call.1} parent=71 // pred_check
          %p653 = pneg %p652
        $region102: #{tpu_custom_call.1} parent=71 // pred_check_branch
          %655 = sbr.rel (%p653) target = $region104
        $region103: #{tpu_custom_call.1} parent=71 // pred_region
          %656 = vst [vmem:[#allocation14] sm:$0xff] 0.0
          %657 = vst [vmem:[#allocation14 + $0x8] sm:$0xff] 0.0
          %658 = vst [vmem:[#allocation14 + $0x10] sm:$0xff] 0.0
          %659 = vst [vmem:[#allocation14 + $0x18] sm:$0xff] 0.0
          %660 = vst [vmem:[#allocation14 + $0x20] sm:$0xff] 0.0
          %661 = vst [vmem:[#allocation14 + $0x28] sm:$0xff] 0.0
          %662 = vst [vmem:[#allocation14 + $0x30] sm:$0xff] 0.0
          %663 = vst [vmem:[#allocation14 + $0x38] sm:$0xff] 0.0
        $region104: #{tpu_custom_call.1} parent=71 // pred_fallthru
          _
        %v664 = vld [vmem:[%s557] sm:$0xf]
        %v665 = vld [vmem:[%s557 + $0x4] sm:$0xf]
        %v666 = vld [vmem:[%s557 + $0x8] sm:$0xf]
        %v667 = vld [vmem:[%s557 + $0xc] sm:$0xf]
        %v668 = vld [vmem:[%s557 + $0x10] sm:$0xf]
        %v669 = vld [vmem:[%s557 + $0x14] sm:$0xf]
        %v670 = vld [vmem:[%s557 + $0x18] sm:$0xf]
        %v671 = vld [vmem:[%s557 + $0x1c] sm:$0xf]
        %v672 = vld [vmem:[%s557 + $0x20] sm:$0xf]
        %v673 = vld [vmem:[%s557 + $0x24] sm:$0xf]
        %v674 = vld [vmem:[%s557 + $0x28] sm:$0xf]
        %v675 = vld [vmem:[%s557 + $0x2c] sm:$0xf]
        %v676 = vld [vmem:[%s557 + $0x30] sm:$0xf]
        %v677 = vld [vmem:[%s557 + $0x34] sm:$0xf]
        %v678 = vld [vmem:[%s557 + $0x38] sm:$0xf]
        %v679 = vld [vmem:[%s557 + $0x3c] sm:$0xf]
        %v680 = vunpack.c.l.bf16 %v664
        %v681 = vunpack.c.l.bf16 %v665
        %v682 = vunpack.c.l.bf16 %v666
        %v683 = vunpack.c.l.bf16 %v667
        %v684 = vunpack.c.l.bf16 %v668
        %v685 = vunpack.c.l.bf16 %v669
        %v686 = vunpack.c.l.bf16 %v670
        %v687 = vunpack.c.l.bf16 %v671
        %v688 = vunpack.c.l.bf16 %v672
        %v689 = vunpack.c.l.bf16 %v673
        %v690 = vunpack.c.l.bf16 %v674
        %v691 = vunpack.c.l.bf16 %v675
        %v692 = vunpack.c.l.bf16 %v676
        %v693 = vunpack.c.l.bf16 %v677
        %v694 = vunpack.c.l.bf16 %v678
        %v695 = vunpack.c.l.bf16 %v679
        %v696 = vld [vmem:[%s566] sm:$0xf]
        %v697 = vld [vmem:[%s566 + $0x4] sm:$0xf]
        %v698 = vld [vmem:[%s566 + $0x8] sm:$0xf]
        %v699 = vld [vmem:[%s566 + $0xc] sm:$0xf]
        %v700 = vld [vmem:[%s566 + $0x10] sm:$0xf]
        %v701 = vld [vmem:[%s566 + $0x14] sm:$0xf]
        %v702 = vld [vmem:[%s566 + $0x18] sm:$0xf]
        %v703 = vld [vmem:[%s566 + $0x1c] sm:$0xf]
        %v704 = vld [vmem:[%s566 + $0x20] sm:$0xf]
        %v705 = vld [vmem:[%s566 + $0x24] sm:$0xf]
        %v706 = vld [vmem:[%s566 + $0x28] sm:$0xf]
        %v707 = vld [vmem:[%s566 + $0x2c] sm:$0xf]
        %v708 = vld [vmem:[%s566 + $0x30] sm:$0xf]
        %v709 = vld [vmem:[%s566 + $0x34] sm:$0xf]
        %v710 = vld [vmem:[%s566 + $0x38] sm:$0xf]
        %v711 = vld [vmem:[%s566 + $0x3c] sm:$0xf]
        %v712 = vunpack.c.l.bf16 %v696
        %v713 = vunpack.c.l.bf16 %v697
        %v714 = vunpack.c.l.bf16 %v698
        %v715 = vunpack.c.l.bf16 %v699
        %v716 = vunpack.c.l.bf16 %v700
        %v717 = vunpack.c.l.bf16 %v701
        %v718 = vunpack.c.l.bf16 %v702
        %v719 = vunpack.c.l.bf16 %v703
        %v720 = vunpack.c.l.bf16 %v704
        %v721 = vunpack.c.l.bf16 %v705
        %v722 = vunpack.c.l.bf16 %v706
        %v723 = vunpack.c.l.bf16 %v707
        %v724 = vunpack.c.l.bf16 %v708
        %v725 = vunpack.c.l.bf16 %v709
        %v726 = vunpack.c.l.bf16 %v710
        %v727 = vunpack.c.l.bf16 %v711
        %v728 = vmul.f32 %v680, %v712
        %v729 = vmul.f32 %v681, %v713
        %v730 = vmul.f32 %v682, %v714
        %v731 = vmul.f32 %v683, %v715
        %v732 = vmul.f32 %v684, %v716
        %v733 = vmul.f32 %v685, %v717
        %v734 = vmul.f32 %v686, %v718
        %v735 = vmul.f32 %v687, %v719
        %v736 = vmul.f32 %v688, %v720
        %v737 = vmul.f32 %v689, %v721
        %v738 = vmul.f32 %v690, %v722
        %v739 = vmul.f32 %v691, %v723
        %v740 = vmul.f32 %v692, %v724
        %v741 = vmul.f32 %v693, %v725
        %v742 = vmul.f32 %v694, %v726
        %v743 = vmul.f32 %v695, %v727
        %v744 = vld [vmem:[%s575] sm:$0xf]
        %v745 = vld [vmem:[%s575 + $0x4] sm:$0xf]
        %v746 = vld [vmem:[%s575 + $0x8] sm:$0xf]
        %v747 = vld [vmem:[%s575 + $0xc] sm:$0xf]
        %v748 = vld [vmem:[%s575 + $0x10] sm:$0xf]
        %v749 = vld [vmem:[%s575 + $0x14] sm:$0xf]
        %v750 = vld [vmem:[%s575 + $0x18] sm:$0xf]
        %v751 = vld [vmem:[%s575 + $0x1c] sm:$0xf]
        %v752 = vld [vmem:[%s575 + $0x20] sm:$0xf]
        %v753 = vld [vmem:[%s575 + $0x24] sm:$0xf]
        %v754 = vld [vmem:[%s575 + $0x28] sm:$0xf]
        %v755 = vld [vmem:[%s575 + $0x2c] sm:$0xf]
        %v756 = vld [vmem:[%s575 + $0x30] sm:$0xf]
        %v757 = vld [vmem:[%s575 + $0x34] sm:$0xf]
        %v758 = vld [vmem:[%s575 + $0x38] sm:$0xf]
        %v759 = vld [vmem:[%s575 + $0x3c] sm:$0xf]
        %v760 = vpack.c.bf16 %v729, %v728
        %v761 = vpack.c.bf16 %v731, %v730
        %v762 = vpack.c.bf16 %v733, %v732
        %v763 = vpack.c.bf16 %v735, %v734
        %v764 = vpack.c.bf16 %v737, %v736
        %v765 = vpack.c.bf16 %v739, %v738
        %v766 = vpack.c.bf16 %v741, %v740
        %v767 = vpack.c.bf16 %v743, %v742
        %v784 = vunpack.c.l.b16 %v744
        %v785 = vunpack.c.l.b16 %v745
        %v786 = vunpack.c.l.b16 %v746
        %v787 = vunpack.c.l.b16 %v747
        %v788 = vunpack.c.l.b16 %v748
        %v789 = vunpack.c.l.b16 %v749
        %v790 = vunpack.c.l.b16 %v750
        %v791 = vunpack.c.l.b16 %v751
        %v792 = vunpack.c.l.b16 %v752
        %v793 = vunpack.c.l.b16 %v753
        %v794 = vunpack.c.l.b16 %v754
        %v795 = vunpack.c.l.b16 %v755
        %v796 = vunpack.c.l.b16 %v756
        %v797 = vunpack.c.l.b16 %v757
        %v798 = vunpack.c.l.b16 %v758
        %v799 = vunpack.c.l.b16 %v759
        %v800 = vpack.c.b16 %v785, %v784
        %v801 = vpack.c.b16 %v787, %v786
        %v802 = vpack.c.b16 %v789, %v788
        %v803 = vpack.c.b16 %v791, %v790
        %v804 = vpack.c.b16 %v793, %v792
        %v805 = vpack.c.b16 %v795, %v794
        %v806 = vpack.c.b16 %v797, %v796
        %v807 = vpack.c.b16 %v799, %v798
        %816 = vmatprep.subr.bf16.mxu0 0
        %817 = vmatpush1.bf16.msra.mxu0 %v800
        %818 = vmatprep.subr.bf16.mxu0 0
        %819 = vmatpush1.bf16.msra.mxu0 %v801
        %820 = vmatprep.subr.bf16.mxu0 0
        %821 = vmatpush1.bf16.msra.mxu0 %v802
        %822 = vmatprep.subr.bf16.mxu0 0
        %823 = vmatpush1.bf16.msra.mxu0 %v803
        %824 = vmatprep.subr.bf16.mxu0 0
        %825 = vmatpush1.bf16.msra.mxu0 %v804
        %826 = vmatprep.subr.bf16.mxu0 0
        %827 = vmatpush1.bf16.msra.mxu0 %v805
        %828 = vmatprep.subr.bf16.mxu0 0
        %829 = vmatpush1.bf16.msra.mxu0 %v806
        %830 = vmatprep.subr.bf16.mxu0 0
        %831 = vmatpush1.bf16.msra.mxu0 %v807
        %832 = vmatprep.subr.bf16.mxu0 0
        %833 = vmatpush1.bf16.msra.mxu0 0
        %834 = vmatprep.subr.bf16.mxu0 0
        %835 = vmatpush1.bf16.msra.mxu0 0
        %836 = vmatprep.subr.bf16.mxu0 0
        %837 = vmatpush1.bf16.msra.mxu0 0
        %838 = vmatprep.subr.bf16.mxu0 0
        %839 = vmatpush1.bf16.msra.mxu0 0
        %840 = vmatprep.subr.bf16.mxu0 0
        %841 = vmatpush1.bf16.msra.mxu0 0
        %842 = vmatprep.subr.bf16.mxu0 0
        %843 = vmatpush1.bf16.msra.mxu0 0
        %844 = vmatprep.subr.bf16.mxu0 0
        %845 = vmatpush1.bf16.msra.mxu0 0
        %846 = vmatprep.subr.bf16.mxu0 0
        %847 = vmatpush1.bf16.msra.mxu0 0
        %848 = vmatprep.mubr.bf16.mxu0 0
        %849 = vmatmul.mubr.bf16.gmra.mrb[0].mxu0 %v760
        %v850 = vpop.f32.mrb[0].mxu0
        %v851 = vadd.f32 0.0, %v850
        %v852 = vpop.f32.mrb[0].mxu0
        %v853 = vpop.f32.mrb[0].mxu0
        %v854 = vadd.f32 0.0, %v853
        %v855 = vpop.f32.mrb[0].mxu0
        %856 = vmatprep.mubr.bf16.mxu0 0
        %857 = vmatmul.mubr.bf16.gmra.mrb[0].mxu0 %v761
        %v858 = vpop.f32.mrb[0].mxu0
        %v859 = vadd.f32 0.0, %v858
        %v860 = vpop.f32.mrb[0].mxu0
        %v861 = vpop.f32.mrb[0].mxu0
        %v862 = vadd.f32 0.0, %v861
        %v863 = vpop.f32.mrb[0].mxu0
        %864 = vmatprep.mubr.bf16.mxu0 0
        %865 = vmatmul.mubr.bf16.gmra.mrb[0].mxu0 %v762
        %v866 = vpop.f32.mrb[0].mxu0
        %v867 = vadd.f32 0.0, %v866
        %v868 = vpop.f32.mrb[0].mxu0
        %v869 = vpop.f32.mrb[0].mxu0
        %v870 = vadd.f32 0.0, %v869
        %v871 = vpop.f32.mrb[0].mxu0
        %872 = vmatprep.mubr.bf16.mxu0 0
        %873 = vmatmul.mubr.bf16.gmra.mrb[0].mxu0 %v763
        %v874 = vpop.f32.mrb[0].mxu0
        %v875 = vadd.f32 0.0, %v874
        %v876 = vpop.f32.mrb[0].mxu0
        %v877 = vpop.f32.mrb[0].mxu0
        %v878 = vadd.f32 0.0, %v877
        %v879 = vpop.f32.mrb[0].mxu0
        %880 = vmatprep.mubr.bf16.mxu0 0
        %881 = vmatmul.mubr.bf16.gmra.mrb[0].mxu0 %v764
        %v882 = vpop.f32.mrb[0].mxu0
        %v883 = vadd.f32 0.0, %v882
        %v884 = vpop.f32.mrb[0].mxu0
        %v885 = vpop.f32.mrb[0].mxu0
        %v886 = vadd.f32 0.0, %v885
        %v887 = vpop.f32.mrb[0].mxu0
        %888 = vmatprep.mubr.bf16.mxu0 0
        %889 = vmatmul.mubr.bf16.gmra.mrb[0].mxu0 %v765
        %v890 = vpop.f32.mrb[0].mxu0
        %v891 = vadd.f32 0.0, %v890
        %v892 = vpop.f32.mrb[0].mxu0
        %v893 = vpop.f32.mrb[0].mxu0
        %v894 = vadd.f32 0.0, %v893
        %v895 = vpop.f32.mrb[0].mxu0
        %896 = vmatprep.mubr.bf16.mxu0 0
        %897 = vmatmul.mubr.bf16.gmra.mrb[0].mxu0 %v766
        %v898 = vpop.f32.mrb[0].mxu0
        %v899 = vadd.f32 0.0, %v898
        %v900 = vpop.f32.mrb[0].mxu0
        %v901 = vpop.f32.mrb[0].mxu0
        %v902 = vadd.f32 0.0, %v901
        %v903 = vpop.f32.mrb[0].mxu0
        %904 = vmatprep.mubr.bf16.mxu0 0
        %905 = vmatmul.mubr.bf16.gmra.mrb[0].mxu0 %v767
        %v906 = vpop.f32.mrb[0].mxu0
        %v907 = vadd.f32 0.0, %v906
        %v908 = vpop.f32.mrb[0].mxu0
        %v909 = vpop.f32.mrb[0].mxu0
        %v910 = vadd.f32 0.0, %v909
        %v911 = vpop.f32.mrb[0].mxu0
        %912 = vdwg.mxu0
        %v913 = vlaneseq
        %v914 = vshrl.u32 %v913, 7
        %v915 = vadd.s32 %v914, 8
        %v916 = vadd.s32 %v914, 16
        %v917 = vadd.s32 %v914, 24
        %v918 = vadd.s32 %v914, 32
        %v919 = vadd.s32 %v914, 40
        %v920 = vadd.s32 %v914, 48
        %v921 = vadd.s32 %v914, 56
        %v922 = vld [vmem:[%s548] sm:$0x1]
        %v923 = vlaneseq
        %v924 = vshrl.u32 %v923, 7
        %v925 = vsub.s32 0, %v924
        %v926 = vrot.slane %v922, %v925
        %vm927 = vcmp.eq.s32.totalorder %v926, %v914
        %vm928 = vcmp.eq.s32.totalorder %v926, %v915
        %vm929 = vcmp.eq.s32.totalorder %v926, %v916
        %vm930 = vcmp.eq.s32.totalorder %v926, %v917
        %vm931 = vcmp.eq.s32.totalorder %v926, %v918
        %vm932 = vcmp.eq.s32.totalorder %v926, %v919
        %vm933 = vcmp.eq.s32.totalorder %v926, %v920
        %vm934 = vcmp.eq.s32.totalorder %v926, %v921
        %v935 = vld [vmem:[%s646] sm:$0x1]
        %v937 = vlaneseq
        %v938 = vshrl.u32 %v937, 7
        %v939 = vsub.s32 0, %v938
        %v940 = vrot.slane %v935, %v939
        %v942 = vsel %vm927, %v940, 0.0
        %v943 = vsel %vm928, %v940, 0.0
        %v944 = vsel %vm929, %v940, 0.0
        %v945 = vsel %vm930, %v940, 0.0
        %v946 = vsel %vm931, %v940, 0.0
        %v947 = vsel %vm932, %v940, 0.0
        %v948 = vsel %vm933, %v940, 0.0
        %v949 = vsel %vm934, %v940, 0.0
        %v950 = vld [vmem:[#allocation14] sm:$0xff]
        %v951 = vld [vmem:[#allocation14 + $0x8] sm:$0xff]
        %v952 = vld [vmem:[#allocation14 + $0x10] sm:$0xff]
        %v953 = vld [vmem:[#allocation14 + $0x18] sm:$0xff]
        %v954 = vld [vmem:[#allocation14 + $0x20] sm:$0xff]
        %v955 = vld [vmem:[#allocation14 + $0x28] sm:$0xff]
        %v956 = vld [vmem:[#allocation14 + $0x30] sm:$0xff]
        %v957 = vld [vmem:[#allocation14 + $0x38] sm:$0xff]
        %958 = vmatprep.subr.mxu0 0.0
        %959 = vmatpush1.msra.mxu0 %v851
        %960 = vmatprep.subr.mxu0 0.0
        %961 = vmatpush1.msra.mxu0 %v854
        %962 = vmatprep.subr.mxu0 0.0
        %963 = vmatpush1.msra.mxu0 %v859
        %964 = vmatprep.subr.mxu0 0.0
        %965 = vmatpush1.msra.mxu0 %v862
        %966 = vmatprep.subr.mxu0 0.0
        %967 = vmatpush1.msra.mxu0 %v867
        %968 = vmatprep.subr.mxu0 0.0
        %969 = vmatpush1.msra.mxu0 %v870
        %970 = vmatprep.subr.mxu0 0.0
        %971 = vmatpush1.msra.mxu0 %v875
        %972 = vmatprep.subr.mxu0 0.0
        %973 = vmatpush1.msra.mxu0 %v878
        %974 = vmatprep.subr.mxu0 0.0
        %975 = vmatpush1.msra.mxu0 %v883
        %976 = vmatprep.subr.mxu0 0.0
        %977 = vmatpush1.msra.mxu0 %v886
        %978 = vmatprep.subr.mxu0 0.0
        %979 = vmatpush1.msra.mxu0 %v891
        %980 = vmatprep.subr.mxu0 0.0
        %981 = vmatpush1.msra.mxu0 %v894
        %982 = vmatprep.subr.mxu0 0.0
        %983 = vmatpush1.msra.mxu0 %v899
        %984 = vmatprep.subr.mxu0 0.0
        %985 = vmatpush1.msra.mxu0 %v902
        %986 = vmatprep.subr.mxu0 0.0
        %987 = vmatpush1.msra.mxu0 %v907
        %988 = vmatprep.subr.mxu0 0.0
        %989 = vmatpush1.msra.mxu0 %v910
        %990 = vmatprep.subr.mxu0 0.0
        %991 = vmatpush1.msra.mxu0 0.0
        %992 = vmatprep.subr.mxu0 0.0
        %993 = vmatpush1.msra.mxu0 0.0
        %994 = vmatprep.subr.mxu0 0.0
        %995 = vmatpush1.msra.mxu0 0.0
        %996 = vmatprep.subr.mxu0 0.0
        %997 = vmatpush1.msra.mxu0 0.0
        %998 = vmatprep.subr.mxu0 0.0
        %999 = vmatpush1.msra.mxu0 0.0
        %1000 = vmatprep.subr.mxu0 0.0
        %1001 = vmatpush1.msra.mxu0 0.0
        %1002 = vmatprep.subr.mxu0 0.0
        %1003 = vmatpush1.msra.mxu0 0.0
        %1004 = vmatprep.subr.mxu0 0.0
        %1005 = vmatpush1.msra.mxu0 0.0
        %1006 = vmatprep.subr.mxu0 0.0
        %1007 = vmatpush1.msra.mxu0 0.0
        %1008 = vmatprep.subr.mxu0 0.0
        %1009 = vmatpush1.msra.mxu0 0.0
        %1010 = vmatprep.subr.mxu0 0.0
        %1011 = vmatpush1.msra.mxu0 0.0
        %1012 = vmatprep.subr.mxu0 0.0
        %1013 = vmatpush1.msra.mxu0 0.0
        %1014 = vmatprep.subr.mxu0 0.0
        %1015 = vmatpush1.msra.mxu0 0.0
        %1016 = vmatprep.subr.mxu0 0.0
        %1017 = vmatpush1.msra.mxu0 0.0
        %1018 = vmatprep.subr.mxu0 0.0
        %1019 = vmatpush1.msra.mxu0 0.0
        %1020 = vmatprep.subr.mxu0 0.0
        %1021 = vmatpush1.msra.mxu0 0.0
        %1022 = vmatprep.mubr.f32.mxu0 0.0
        %1023 = vmatmul.mubr.f32.gmra.mrb[0].mxu0 %v942
        %v1024 = vpop.f32.mrb[0].mxu0
        %v1025 = vadd.f32 0.0, %v1024
        %v1026 = vpop.f32.mrb[0].mxu0
        %1027 = vmatprep.mubr.f32.mxu0 0.0
        %1028 = vmatmul.mubr.f32.gmra.mrb[0].mxu0 %v943
        %v1029 = vpop.f32.mrb[0].mxu0
        %v1030 = vadd.f32 0.0, %v1029
        %v1031 = vpop.f32.mrb[0].mxu0
        %1032 = vmatprep.mubr.f32.mxu0 0.0
        %1033 = vmatmul.mubr.f32.gmra.mrb[0].mxu0 %v944
        %v1034 = vpop.f32.mrb[0].mxu0
        %v1035 = vadd.f32 0.0, %v1034
        %v1036 = vpop.f32.mrb[0].mxu0
        %1037 = vmatprep.mubr.f32.mxu0 0.0
        %1038 = vmatmul.mubr.f32.gmra.mrb[0].mxu0 %v945
        %v1039 = vpop.f32.mrb[0].mxu0
        %v1040 = vadd.f32 0.0, %v1039
        %v1041 = vpop.f32.mrb[0].mxu0
        %1042 = vmatprep.mubr.f32.mxu0 0.0
        %1043 = vmatmul.mubr.f32.gmra.mrb[0].mxu0 %v946
        %v1044 = vpop.f32.mrb[0].mxu0
        %v1045 = vadd.f32 0.0, %v1044
        %v1046 = vpop.f32.mrb[0].mxu0
        %1047 = vmatprep.mubr.f32.mxu0 0.0
        %1048 = vmatmul.mubr.f32.gmra.mrb[0].mxu0 %v947
        %v1049 = vpop.f32.mrb[0].mxu0
        %v1050 = vadd.f32 0.0, %v1049
        %v1051 = vpop.f32.mrb[0].mxu0
        %1052 = vmatprep.mubr.f32.mxu0 0.0
        %1053 = vmatmul.mubr.f32.gmra.mrb[0].mxu0 %v948
        %v1054 = vpop.f32.mrb[0].mxu0
        %v1055 = vadd.f32 0.0, %v1054
        %v1056 = vpop.f32.mrb[0].mxu0
        %1057 = vmatprep.mubr.f32.mxu0 0.0
        %1058 = vmatmul.mubr.f32.gmra.mrb[0].mxu0 %v949
        %v1059 = vpop.f32.mrb[0].mxu0
        %v1060 = vadd.f32 0.0, %v1059
        %v1061 = vpop.f32.mrb[0].mxu0
        %1062 = vdwg.mxu0
        %v1063 = vadd.f32 %v950, %v1025
        %v1064 = vadd.f32 %v951, %v1030
        %v1065 = vadd.f32 %v952, %v1035
        %v1066 = vadd.f32 %v953, %v1040
        %v1067 = vadd.f32 %v954, %v1045
        %v1068 = vadd.f32 %v955, %v1050
        %v1069 = vadd.f32 %v956, %v1055
        %v1070 = vadd.f32 %v957, %v1060
        %1071 = vst [vmem:[#allocation14] sm:$0xff] %v1063
        %1072 = vst [vmem:[#allocation14 + $0x8] sm:$0xff] %v1064
        %1073 = vst [vmem:[#allocation14 + $0x10] sm:$0xff] %v1065
        %1074 = vst [vmem:[#allocation14 + $0x18] sm:$0xff] %v1066
        %1075 = vst [vmem:[#allocation14 + $0x20] sm:$0xff] %v1067
        %1076 = vst [vmem:[#allocation14 + $0x28] sm:$0xff] %v1068
        %1077 = vst [vmem:[#allocation14 + $0x30] sm:$0xff] %v1069
        %1078 = vst [vmem:[#allocation14 + $0x38] sm:$0xff] %v1070
        %p1079 = scmp.eq.s32.totalorder %s38, 1
        // Predicated region
        $region105: #{tpu_custom_call.1} parent=71 // pred_check
          %p1080 = pneg %p1079
        $region106: #{tpu_custom_call.1} parent=71 // pred_check_branch
          %1082 = sbr.rel (%p1080) target = $region108
        $region107: #{tpu_custom_call.1} parent=71 // pred_region
          %v1083 = vld [vmem:[#allocation10] sm:$0xff]
          %v1084 = vld [vmem:[#allocation10 + $0x8] sm:$0xff]
          %v1085 = vld [vmem:[#allocation10 + $0x10] sm:$0xff]
          %v1086 = vld [vmem:[#allocation10 + $0x18] sm:$0xff]
          %v1087 = vld [vmem:[#allocation10 + $0x20] sm:$0xff]
          %v1088 = vld [vmem:[#allocation10 + $0x28] sm:$0xff]
          %v1089 = vld [vmem:[#allocation10 + $0x30] sm:$0xff]
          %v1090 = vld [vmem:[#allocation10 + $0x38] sm:$0xff]
          %v1091 = vld [vmem:[%s6] sm:$0x1]
          %v1093 = vlaneseq
          %v1094 = vshrl.u32 %v1093, 7
          %v1095 = vsub.s32 0, %v1094
          %v1096 = vrot.slane %v1091, %v1095
          %v1098 = vmul.f32 %v1083, %v1096
          %v1099 = vmul.f32 %v1084, %v1096
          %v1100 = vmul.f32 %v1085, %v1096
          %v1101 = vmul.f32 %v1086, %v1096
          %v1102 = vmul.f32 %v1087, %v1096
          %v1103 = vmul.f32 %v1088, %v1096
          %v1104 = vmul.f32 %v1089, %v1096
          %v1105 = vmul.f32 %v1090, %v1096
          %v1106 = vpack.c.bf16 %v1099, %v1098
          %v1107 = vpack.c.bf16 %v1101, %v1100
          %v1108 = vpack.c.bf16 %v1103, %v1102
          %v1109 = vpack.c.bf16 %v1105, %v1104
          %v1110 = vld [vmem:[#allocation11] sm:$0xf]
          %v1111 = vld [vmem:[#allocation11 + $0x4] sm:$0xf]
          %v1112 = vld [vmem:[#allocation11 + $0x8] sm:$0xf]
          %v1113 = vld [vmem:[#allocation11 + $0xc] sm:$0xf]
          %v1114 = vld [vmem:[#allocation11 + $0x10] sm:$0xf]
          %v1115 = vld [vmem:[#allocation11 + $0x14] sm:$0xf]
          %v1116 = vld [vmem:[#allocation11 + $0x18] sm:$0xf]
          %v1117 = vld [vmem:[#allocation11 + $0x1c] sm:$0xf]
          %v1118 = vld [vmem:[#allocation11 + $0x20] sm:$0xf]
          %v1119 = vld [vmem:[#allocation11 + $0x24] sm:$0xf]
          %v1120 = vld [vmem:[#allocation11 + $0x28] sm:$0xf]
          %v1121 = vld [vmem:[#allocation11 + $0x2c] sm:$0xf]
          %v1122 = vld [vmem:[#allocation11 + $0x30] sm:$0xf]
          %v1123 = vld [vmem:[#allocation11 + $0x34] sm:$0xf]
          %v1124 = vld [vmem:[#allocation11 + $0x38] sm:$0xf]
          %v1125 = vld [vmem:[#allocation11 + $0x3c] sm:$0xf]
          %v1142 = vunpack.c.l.b16 %v1110
          %v1143 = vunpack.c.l.b16 %v1111
          %v1144 = vunpack.c.l.b16 %v1112
          %v1145 = vunpack.c.l.b16 %v1113
          %v1146 = vunpack.c.l.b16 %v1114
          %v1147 = vunpack.c.l.b16 %v1115
          %v1148 = vunpack.c.l.b16 %v1116
          %v1149 = vunpack.c.l.b16 %v1117
          %v1150 = vunpack.c.l.b16 %v1118
          %v1151 = vunpack.c.l.b16 %v1119
          %v1152 = vunpack.c.l.b16 %v1120
          %v1153 = vunpack.c.l.b16 %v1121
          %v1154 = vunpack.c.l.b16 %v1122
          %v1155 = vunpack.c.l.b16 %v1123
          %v1156 = vunpack.c.l.b16 %v1124
          %v1157 = vunpack.c.l.b16 %v1125
          %v1158 = vpack.c.b16 %v1143, %v1142
          %v1159 = vpack.c.b16 %v1145, %v1144
          %v1160 = vpack.c.b16 %v1147, %v1146
          %v1161 = vpack.c.b16 %v1149, %v1148
          %v1162 = vpack.c.b16 %v1151, %v1150
          %v1163 = vpack.c.b16 %v1153, %v1152
          %v1164 = vpack.c.b16 %v1155, %v1154
          %v1165 = vpack.c.b16 %v1157, %v1156
          %1174 = vmatprep.subr.bf16.mxu0 0
          %1175 = vmatpush1.bf16.msra.mxu0 %v1158
          %1176 = vmatprep.subr.bf16.mxu0 0
          %1177 = vmatpush1.bf16.msra.mxu0 %v1159
          %1178 = vmatprep.subr.bf16.mxu0 0
          %1179 = vmatpush1.bf16.msra.mxu0 %v1160
          %1180 = vmatprep.subr.bf16.mxu0 0
          %1181 = vmatpush1.bf16.msra.mxu0 %v1161
          %1182 = vmatprep.subr.bf16.mxu0 0
          %1183 = vmatpush1.bf16.msra.mxu0 %v1162
          %1184 = vmatprep.subr.bf16.mxu0 0
          %1185 = vmatpush1.bf16.msra.mxu0 %v1163
          %1186 = vmatprep.subr.bf16.mxu0 0
          %1187 = vmatpush1.bf16.msra.mxu0 %v1164
          %1188 = vmatprep.subr.bf16.mxu0 0
          %1189 = vmatpush1.bf16.msra.mxu0 %v1165
          %1190 = vmatprep.subr.bf16.mxu0 0
          %1191 = vmatpush1.bf16.msra.mxu0 0
          %1192 = vmatprep.subr.bf16.mxu0 0
          %1193 = vmatpush1.bf16.msra.mxu0 0
          %1194 = vmatprep.subr.bf16.mxu0 0
          %1195 = vmatpush1.bf16.msra.mxu0 0
          %1196 = vmatprep.subr.bf16.mxu0 0
          %1197 = vmatpush1.bf16.msra.mxu0 0
          %1198 = vmatprep.subr.bf16.mxu0 0
          %1199 = vmatpush1.bf16.msra.mxu0 0
          %1200 = vmatprep.subr.bf16.mxu0 0
          %1201 = vmatpush1.bf16.msra.mxu0 0
          %1202 = vmatprep.subr.bf16.mxu0 0
          %1203 = vmatpush1.bf16.msra.mxu0 0
          %1204 = vmatprep.subr.bf16.mxu0 0
          %1205 = vmatpush1.bf16.msra.mxu0 0
          %1206 = vmatprep.mubr.bf16.mxu0 0
          %1207 = vmatmul.mubr.bf16.gmra.mrb[0].mxu0 %v1106
          %v1208 = vpop.f32.mrb[0].mxu0
          %v1209 = vadd.f32 0.0, %v1208
          %v1210 = vpop.f32.mrb[0].mxu0
          %v1211 = vpop.f32.mrb[0].mxu0
          %v1212 = vadd.f32 0.0, %v1211
          %v1213 = vpop.f32.mrb[0].mxu0
          %1214 = vmatprep.mubr.bf16.mxu0 0
          %1215 = vmatmul.mubr.bf16.gmra.mrb[0].mxu0 %v1107
          %v1216 = vpop.f32.mrb[0].mxu0
          %v1217 = vadd.f32 0.0, %v1216
          %v1218 = vpop.f32.mrb[0].mxu0
          %v1219 = vpop.f32.mrb[0].mxu0
          %v1220 = vadd.f32 0.0, %v1219
          %v1221 = vpop.f32.mrb[0].mxu0
          %1222 = vmatprep.mubr.bf16.mxu0 0
          %1223 = vmatmul.mubr.bf16.gmra.mrb[0].mxu0 %v1108
          %v1224 = vpop.f32.mrb[0].mxu0
          %v1225 = vadd.f32 0.0, %v1224
          %v1226 = vpop.f32.mrb[0].mxu0
          %v1227 = vpop.f32.mrb[0].mxu0
          %v1228 = vadd.f32 0.0, %v1227
          %v1229 = vpop.f32.mrb[0].mxu0
          %1230 = vmatprep.mubr.bf16.mxu0 0
          %1231 = vmatmul.mubr.bf16.gmra.mrb[0].mxu0 %v1109
          %v1232 = vpop.f32.mrb[0].mxu0
          %v1233 = vadd.f32 0.0, %v1232
          %v1234 = vpop.f32.mrb[0].mxu0
          %v1235 = vpop.f32.mrb[0].mxu0
          %v1236 = vadd.f32 0.0, %v1235
          %v1237 = vpop.f32.mrb[0].mxu0
          %1238 = vdwg.mxu0
          %v1239 = vld [vmem:[#allocation14] sm:$0xff]
          %v1240 = vld [vmem:[#allocation14 + $0x8] sm:$0xff]
          %v1241 = vld [vmem:[#allocation14 + $0x10] sm:$0xff]
          %v1242 = vld [vmem:[#allocation14 + $0x18] sm:$0xff]
          %v1243 = vld [vmem:[#allocation14 + $0x20] sm:$0xff]
          %v1244 = vld [vmem:[#allocation14 + $0x28] sm:$0xff]
          %v1245 = vld [vmem:[#allocation14 + $0x30] sm:$0xff]
          %v1246 = vld [vmem:[#allocation14 + $0x38] sm:$0xff]
          %v1247 = vrcp.pop 3.0
          %v1248 = vmul.f32 %v1239, %v1247
          %v1249 = vmul.f32 %v1240, %v1247
          %v1250 = vmul.f32 %v1241, %v1247
          %v1251 = vmul.f32 %v1242, %v1247
          %v1252 = vmul.f32 %v1243, %v1247
          %v1253 = vmul.f32 %v1244, %v1247
          %v1254 = vmul.f32 %v1245, %v1247
          %v1255 = vmul.f32 %v1246, %v1247
          %v1256 = vmul.f32 %v1209, %v1247
          %v1257 = vmul.f32 %v1212, %v1247
          %v1258 = vmul.f32 %v1217, %v1247
          %v1259 = vmul.f32 %v1220, %v1247
          %v1260 = vmul.f32 %v1225, %v1247
          %v1261 = vmul.f32 %v1228, %v1247
          %v1262 = vmul.f32 %v1233, %v1247
          %v1263 = vmul.f32 %v1236, %v1247
          %v1264 = vadd.f32 %v1248, %v1256
          %v1265 = vadd.f32 %v1249, %v1257
          %v1266 = vadd.f32 %v1250, %v1258
          %v1267 = vadd.f32 %v1251, %v1259
          %v1268 = vadd.f32 %v1252, %v1260
          %v1269 = vadd.f32 %v1253, %v1261
          %v1270 = vadd.f32 %v1254, %v1262
          %v1271 = vadd.f32 %v1255, %v1263
          %v1272 = vld [vmem:[%s8] sm:$0x1]
          %v1274 = vlaneseq
          %v1275 = vshrl.u32 %v1274, 7
          %v1276 = vsub.s32 0, %v1275
          %v1277 = vrot.slane %v1272, %v1276
          %v1279 = vadd.f32 %v1264, %v1277
          %v1280 = vadd.f32 %v1265, %v1277
          %v1281 = vadd.f32 %v1266, %v1277
          %v1282 = vadd.f32 %v1267, %v1277
          %v1283 = vadd.f32 %v1268, %v1277
          %v1284 = vadd.f32 %v1269, %v1277
          %v1285 = vadd.f32 %v1270, %v1277
          %v1286 = vadd.f32 %v1271, %v1277
          %v1287 = vadd.f32 %v1279, %v1280
          %v1288 = vadd.f32 %v1287, %v1281
          %v1289 = vadd.f32 %v1288, %v1282
          %v1290 = vadd.f32 %v1289, %v1283
          %v1291 = vadd.f32 %v1290, %v1284
          %v1292 = vadd.f32 %v1291, %v1285
          %v1293 = vadd.f32 %v1292, %v1286
          %v1294 = vrot.slane %v1293, 4
          %v1295 = vadd.f32 %v1293, %v1294
          %v1296 = vrot.slane %v1295, 2
          %v1297 = vadd.f32 %v1295, %v1296
          %v1298 = vrot.slane %v1297, 1
          %v1299 = vadd.f32 %v1297, %v1298
          %v1300 = vrcp.pop 64.0
          %v1301 = vmul.f32 %v1299, %v1300
          %v1302 = vsub.f32 %v1279, %v1301
          %v1303 = vsub.f32 %v1280, %v1301
          %v1304 = vsub.f32 %v1281, %v1301
          %v1305 = vsub.f32 %v1282, %v1301
          %v1306 = vsub.f32 %v1283, %v1301
          %v1307 = vsub.f32 %v1284, %v1301
          %v1308 = vsub.f32 %v1285, %v1301
          %v1309 = vsub.f32 %v1286, %v1301
          %v1310 = vmul.f32 %v1302, %v1302
          %v1311 = vmul.f32 %v1303, %v1303
          %v1312 = vmul.f32 %v1304, %v1304
          %v1313 = vmul.f32 %v1305, %v1305
          %v1314 = vmul.f32 %v1306, %v1306
          %v1315 = vmul.f32 %v1307, %v1307
          %v1316 = vmul.f32 %v1308, %v1308
          %v1317 = vmul.f32 %v1309, %v1309
          %v1318 = vadd.f32 %v1310, %v1311
          %v1319 = vadd.f32 %v1318, %v1312
          %v1320 = vadd.f32 %v1319, %v1313
          %v1321 = vadd.f32 %v1320, %v1314
          %v1322 = vadd.f32 %v1321, %v1315
          %v1323 = vadd.f32 %v1322, %v1316
          %v1324 = vadd.f32 %v1323, %v1317
          %v1325 = vrot.slane %v1324, 4
          %v1326 = vadd.f32 %v1324, %v1325
          %v1327 = vrot.slane %v1326, 2
          %v1328 = vadd.f32 %v1326, %v1327
          %v1329 = vrot.slane %v1328, 1
          %v1330 = vadd.f32 %v1328, %v1329
          %v1331 = vmul.f32 %v1330, %v1300
          %v1332 = vadd.f32 %v1331, 1e-05
          %v1333 = vrsqrt.pop %v1332
          %v1334 = vmul.f32 %v1302, %v1333
          %v1335 = vmul.f32 %v1303, %v1333
          %v1336 = vmul.f32 %v1304, %v1333
          %v1337 = vmul.f32 %v1305, %v1333
          %v1338 = vmul.f32 %v1306, %v1333
          %v1339 = vmul.f32 %v1307, %v1333
          %v1340 = vmul.f32 %v1308, %v1333
          %v1341 = vmul.f32 %v1309, %v1333
          %v1342 = vld [vmem:[%s9] sm:$0x1]
          %v1344 = vlaneseq
          %v1345 = vshrl.u32 %v1344, 7
          %v1346 = vsub.s32 0, %v1345
          %v1347 = vrot.slane %v1342, %v1346
          %v1349 = vmul.f32 %v1334, %v1347
          %v1350 = vmul.f32 %v1335, %v1347
          %v1351 = vmul.f32 %v1336, %v1347
          %v1352 = vmul.f32 %v1337, %v1347
          %v1353 = vmul.f32 %v1338, %v1347
          %v1354 = vmul.f32 %v1339, %v1347
          %v1355 = vmul.f32 %v1340, %v1347
          %v1356 = vmul.f32 %v1341, %v1347
          %v1357 = vld [vmem:[%s10] sm:$0x1]
          %v1359 = vlaneseq
          %v1360 = vshrl.u32 %v1359, 7
          %v1361 = vsub.s32 0, %v1360
          %v1362 = vrot.slane %v1357, %v1361
          %v1364 = vadd.f32 %v1349, %v1362
          %v1365 = vadd.f32 %v1350, %v1362
          %v1366 = vadd.f32 %v1351, %v1362
          %v1367 = vadd.f32 %v1352, %v1362
          %v1368 = vadd.f32 %v1353, %v1362
          %v1369 = vadd.f32 %v1354, %v1362
          %v1370 = vadd.f32 %v1355, %v1362
          %v1371 = vadd.f32 %v1356, %v1362
          %1372 = vst [vmem:[#allocation14] sm:$0xff] %v1364
          %1373 = vst [vmem:[#allocation14 + $0x8] sm:$0xff] %v1365
          %1374 = vst [vmem:[#allocation14 + $0x10] sm:$0xff] %v1366
          %1375 = vst [vmem:[#allocation14 + $0x18] sm:$0xff] %v1367
          %1376 = vst [vmem:[#allocation14 + $0x20] sm:$0xff] %v1368
          %1377 = vst [vmem:[#allocation14 + $0x28] sm:$0xff] %v1369
          %1378 = vst [vmem:[#allocation14 + $0x30] sm:$0xff] %v1370
          %1379 = vst [vmem:[#allocation14 + $0x38] sm:$0xff] %v1371
          %v1380 = vld [vmem:[%s11] sm:$0xff]
          %v1381 = vld [vmem:[#allocation13] sm:$0xff]
          %v1382 = vld [vmem:[#allocation13 + $0x8] sm:$0xff]
          %v1383 = vld [vmem:[#allocation13 + $0x10] sm:$0xff]
          %v1384 = vld [vmem:[#allocation13 + $0x18] sm:$0xff]
          %v1385 = vld [vmem:[#allocation13 + $0x20] sm:$0xff]
          %v1386 = vld [vmem:[#allocation13 + $0x28] sm:$0xff]
          %v1387 = vld [vmem:[#allocation13 + $0x30] sm:$0xff]
          %v1388 = vld [vmem:[#allocation13 + $0x38] sm:$0xff]
          %v1389 = vld [vmem:[#allocation13 + $0x40] sm:$0xff]
          %v1390 = vld [vmem:[#allocation13 + $0x48] sm:$0xff]
          %v1391 = vld [vmem:[#allocation13 + $0x50] sm:$0xff]
          %v1392 = vld [vmem:[#allocation13 + $0x58] sm:$0xff]
          %v1393 = vld [vmem:[#allocation13 + $0x60] sm:$0xff]
          %v1394 = vld [vmem:[#allocation13 + $0x68] sm:$0xff]
          %v1395 = vld [vmem:[#allocation13 + $0x70] sm:$0xff]
          %v1396 = vld [vmem:[#allocation13 + $0x78] sm:$0xff]
          %1397 = vmatprep.subr.mxu0 0.0
          %1398 = vmatpush1.msra.mxu0 %v1381
          %1399 = vmatprep.subr.mxu0 0.0
          %1400 = vmatpush1.msra.mxu0 %v1382
          %1401 = vmatprep.subr.mxu0 0.0
          %1402 = vmatpush1.msra.mxu0 %v1383
          %1403 = vmatprep.subr.mxu0 0.0
          %1404 = vmatpush1.msra.mxu0 %v1384
          %1405 = vmatprep.subr.mxu0 0.0
          %1406 = vmatpush1.msra.mxu0 %v1385
          %1407 = vmatprep.subr.mxu0 0.0
          %1408 = vmatpush1.msra.mxu0 %v1386
          %1409 = vmatprep.subr.mxu0 0.0
          %1410 = vmatpush1.msra.mxu0 %v1387
          %1411 = vmatprep.subr.mxu0 0.0
          %1412 = vmatpush1.msra.mxu0 %v1388
          %1413 = vmatprep.subr.mxu0 0.0
          %1414 = vmatpush1.msra.mxu0 %v1389
          %1415 = vmatprep.subr.mxu0 0.0
          %1416 = vmatpush1.msra.mxu0 %v1390
          %1417 = vmatprep.subr.mxu0 0.0
          %1418 = vmatpush1.msra.mxu0 %v1391
          %1419 = vmatprep.subr.mxu0 0.0
          %1420 = vmatpush1.msra.mxu0 %v1392
          %1421 = vmatprep.subr.mxu0 0.0
          %1422 = vmatpush1.msra.mxu0 %v1393
          %1423 = vmatprep.subr.mxu0 0.0
          %1424 = vmatpush1.msra.mxu0 %v1394
          %1425 = vmatprep.subr.mxu0 0.0
          %1426 = vmatpush1.msra.mxu0 %v1395
          %1427 = vmatprep.subr.mxu0 0.0
          %1428 = vmatpush1.msra.mxu0 %v1396
          %1429 = vmatprep.subr.mxu0 0.0
          %1430 = vmatpush1.msra.mxu0 0.0
          %1431 = vmatprep.subr.mxu0 0.0
          %1432 = vmatpush1.msra.mxu0 0.0
          %1433 = vmatprep.subr.mxu0 0.0
          %1434 = vmatpush1.msra.mxu0 0.0
          %1435 = vmatprep.subr.mxu0 0.0
          %1436 = vmatpush1.msra.mxu0 0.0
          %1437 = vmatprep.subr.mxu0 0.0
          %1438 = vmatpush1.msra.mxu0 0.0
          %1439 = vmatprep.subr.mxu0 0.0
          %1440 = vmatpush1.msra.mxu0 0.0
          %1441 = vmatprep.subr.mxu0 0.0
          %1442 = vmatpush1.msra.mxu0 0.0
          %1443 = vmatprep.subr.mxu0 0.0
          %1444 = vmatpush1.msra.mxu0 0.0
          %1445 = vmatprep.subr.mxu0 0.0
          %1446 = vmatpush1.msra.mxu0 0.0
          %1447 = vmatprep.subr.mxu0 0.0
          %1448 = vmatpush1.msra.mxu0 0.0
          %1449 = vmatprep.subr.mxu0 0.0
          %1450 = vmatpush1.msra.mxu0 0.0
          %1451 = vmatprep.subr.mxu0 0.0
          %1452 = vmatpush1.msra.mxu0 0.0
          %1453 = vmatprep.subr.mxu0 0.0
          %1454 = vmatpush1.msra.mxu0 0.0
          %1455 = vmatprep.subr.mxu0 0.0
          %1456 = vmatpush1.msra.mxu0 0.0
          %1457 = vmatprep.subr.mxu0 0.0
          %1458 = vmatpush1.msra.mxu0 0.0
          %1459 = vmatprep.subr.mxu0 0.0
          %1460 = vmatpush1.msra.mxu0 0.0
          %1461 = vmatprep.mubr.f32.mxu0 0.0
          %1462 = vmatmul.mubr.f32.gmra.mrb[0].mxu0 %v1380
          %v1463 = vpop.f32.mrb[0].mxu0
          %v1464 = vadd.f32 0.0, %v1463
          %v1465 = vpop.f32.mrb[0].mxu0
          %1466 = vdwg.mxu0
          %1467 = vst [vmem:[#allocation15] sm:$0xff] %v1464
        $region108: #{tpu_custom_call.1} parent=71 // pred_fallthru
          _
        // Predicated region
        $region109: #{tpu_custom_call.1} parent=71 // pred_check
          %p1468 = pneg %p353
        $region110: #{tpu_custom_call.1} parent=71 // pred_check_branch
          %1470 = sbr.rel (%p1468) target = $region112
        $region111: #{tpu_custom_call.1} parent=71 // pred_region
          %s1472 = ssub.s32 1024, 1024
          %1473 = vsyncadd [#allocation4], %s1472
          %s1474 = sshll.u32 [#allocation14], 4
          %s1475 = int_to_ptr.vmem [resolvable:$true] %s1474
          %1480 = dma.vmem_to_hbm [thread:$0]  %s1475, 1024, %s13, [#allocation4], 128, 128, 8
        $region112: #{tpu_custom_call.1} parent=71 // pred_fallthru
          _
        // Predicated region
        $region113: #{tpu_custom_call.1} parent=71 // pred_check
          %p1481 = pneg %p374
        $region114: #{tpu_custom_call.1} parent=71 // pred_check_branch
          %1483 = sbr.rel (%p1481) target = $region116
        $region115: #{tpu_custom_call.1} parent=71 // pred_region
          %s1485 = ssub.s32 128, 128
          %1486 = vsyncadd [#allocation16], %s1485
          %s1488 = sshll.u32 [#allocation15], 4
          %s1489 = int_to_ptr.vmem [resolvable:$true] %s1488
          %1491 = dma.vmem_to_hbm [thread:$0]  %s1489, 128, %s14, [#allocation16]
        $region116: #{tpu_custom_call.1} parent=71 // pred_fallthru
          _
        // Predicated region
        $region117: #{tpu_custom_call.1} parent=71 // pred_check
          %p1492 = pneg %p353
        $region118: #{tpu_custom_call.1} parent=71 // pred_check_branch
          %1494 = sbr.rel (%p1492) target = $region120
        $region119: #{tpu_custom_call.1} parent=71 // pred_region
          %1495 = dma.done [#allocation4], 1024
        $region120: #{tpu_custom_call.1} parent=71 // pred_fallthru
          _
        // Predicated region
        $region121: #{tpu_custom_call.1} parent=71 // pred_check
          %p1496 = pneg %p374
        $region122: #{tpu_custom_call.1} parent=71 // pred_check_branch
          %1498 = sbr.rel (%p1496) target = $region124
        $region123: #{tpu_custom_call.1} parent=71 // pred_region
          %1499 = dma.done [#allocation16], 128
        $region124: #{tpu_custom_call.1} parent=71 // pred_fallthru
          _
      $region72: #{tpu_custom_call.1} parent=5 // pred_fallthru
        _
      %p1500 = scmp.le.s32.totalorder 2, %s33
      // Predicated region
      $region125: #{tpu_custom_call.1} parent=5 // pred_check
        %p1501 = pneg %p1500
      $region126: #{tpu_custom_call.1} parent=5 // pred_check_branch
        %1503 = sbr.rel (%p1501) target = $region128
      $region127: #{tpu_custom_call.1} parent=5 // pred_region
        %s1504 = ssub.s32 %s33, 2
      $region128: #{tpu_custom_call.1} parent=5 // pred_fallthru
        _
    $region6: #{tpu_custom_call.1} parent=1 // loop_footer
      %s37 = sadd.s32 1, %s33
    $region7: #{tpu_custom_call.1} parent=1 // loop_footer_branch
      %32 = sbr.rel target = $region3
    $region8: #{tpu_custom_call.1} parent=1 // loop_exit
      _
    %1505 = vsyncpa [#allocation3], 1
    %s1506 = scalar_lea.sflag [#allocation3], 1
    %1507 = vsyncpa %s1506, 1
    %1508 = vsyncpa [#allocation6], 1
    %s1509 = scalar_lea.sflag [#allocation6], 1
    %1510 = vsyncpa %s1509, 1
    %1511 = vsyncpa [#allocation9], 1
    %s1512 = scalar_lea.sflag [#allocation9], 1
    %1513 = vsyncpa %s1512, 1
    %1514 = vsyncpa [#allocation12], 1
    %1515 = vsyncpa [#allocation4], 1
    %s1516 = scalar_lea.sflag [#allocation4], 1
    %1517 = vsyncpa %s1516, 1
    %1518 = vsyncpa [#allocation16], 1

</llo_original>
